<compile_context>
chip_gen: v6e
topology: v6e:2x2x1
jax: 0.10.0
libtpu: 0.0.40
codegen_flags: <defaults>
</compile_context>

<pallas_src>
import functools
import math

import jax
import jax.numpy as jnp
from jax import lax
from jax.experimental import pallas as pl
from jax.experimental.pallas import tpu as pltpu


def _flash_sdpa_kernel(q_ref, k_ref, v_ref, o_ref, q_sc, m_sc, l_sc, acc_sc, *, scale):
    kv = pl.program_id(2)

    # Init accumulators and stage the scaled bf16 Q tile once per q tile
    # (kv is the innermost grid axis, so this runs only at kv == 0).
    @pl.when(kv == 0)
    def _():
        q_sc[...] = (q_ref[0].astype(jnp.float32) * scale).astype(jnp.bfloat16)
        m_sc[...] = jnp.full_like(m_sc, -jnp.inf)
        l_sc[...] = jnp.zeros_like(l_sc)
        acc_sc[...] = jnp.zeros_like(acc_sc)

    # Scores: contract last dims directly (no explicit k.T / XLU transpose).
    # bf16 MXU operands, f32 accumulation.
    s = lax.dot_general(
        q_sc[...], k_ref[0], (((1,), (1,)), ((), ())),
        preferred_element_type=jnp.float32,
    )                                                             # (tq, tk) f32

    # Online (streaming) softmax update — all stats in f32.
    m_prev = m_sc[...]
    m_new = jnp.maximum(m_prev, jnp.max(s, axis=-1, keepdims=True))
    alpha = jnp.exp(m_prev - m_new)
    p = jnp.exp(s - m_new)                                        # (tq, tk) f32
    l_sc[...] = alpha * l_sc[...] + jnp.sum(p, axis=-1, keepdims=True)
    acc_sc[...] = alpha * acc_sc[...] + jnp.dot(
        p.astype(jnp.bfloat16), v_ref[0], preferred_element_type=jnp.float32
    )                                                             # (tq, D) f32
    m_sc[...] = m_new

    # Finalize on the last kv tile: exact normalization (once per q tile).
    @pl.when(kv == pl.num_programs(2) - 1)
    def _():
        o_ref[0] = (acc_sc[...] / l_sc[...]).astype(o_ref.dtype)


def attention(q, k, v, *, tq=256, tk=256):
    """Flash-style scaled dot-product attention: softmax(q @ k^T / sqrt(D)) @ v.

    Computes in bf16 on the MXU with f32 softmax statistics / accumulation and
    returns a bf16 result (the bf16 operand path is the precision floor).
    """
    B, S, D = q.shape
    assert k.shape == (B, S, D) and v.shape == (B, S, D)
    tq = min(tq, S)
    tk = min(tk, S)
    assert S % tq == 0 and S % tk == 0, "S must be divisible by the tile sizes"
    scale = 1.0 / math.sqrt(D)

    # Stream bf16 from HBM: K/V are re-read S/tq times, so this halves the
    # dominant DMA term (no-op if the activations are already bf16).
    q = q.astype(jnp.bfloat16)
    k = k.astype(jnp.bfloat16)
    v = v.astype(jnp.bfloat16)

    kernel = functools.partial(_flash_sdpa_kernel, scale=scale)

    q_spec = pl.BlockSpec((1, tq, D), lambda b, qi, ki: (b, qi, 0))
    kv_spec = pl.BlockSpec((1, tk, D), lambda b, qi, ki: (b, ki, 0))
    o_spec = pl.BlockSpec((1, tq, D), lambda b, qi, ki: (b, qi, 0))

    # Advisory cost: Q/O read+written once, K/V re-streamed S/tq times,
    # exp for every score plus the per-step alpha rescale exps.
    bf16_bytes = 2
    n_q_passes = S // tq
    cost = pl.CostEstimate(
        flops=4 * B * S * S * D,                                   # QK^T + PV
        transcendentals=B * S * S + B * S * (S // tk),             # p exps + alpha exps
        bytes_accessed=(2 * B * S * D * bf16_bytes                 # Q read + O write
                        + 2 * n_q_passes * B * S * D * bf16_bytes  # K,V re-reads
                        ),
    )

    return pl.pallas_call(
        kernel,
        out_shape=jax.ShapeDtypeStruct((B, S, D), jnp.bfloat16),
        grid_spec=pltpu.PrefetchScalarGridSpec(
            num_scalar_prefetch=0,
            grid=(B, S // tq, S // tk),
            in_specs=[q_spec, kv_spec, kv_spec],
            out_specs=o_spec,
            scratch_shapes=[
                pltpu.VMEM((tq, D), jnp.bfloat16),  # scaled Q tile (hoisted)
                pltpu.VMEM((tq, 1), jnp.float32),   # running max  m
                pltpu.VMEM((tq, 1), jnp.float32),   # running sum  l
                pltpu.VMEM((tq, D), jnp.float32),   # output accumulator
            ],
        ),
        compiler_params=pltpu.CompilerParams(
            dimension_semantics=("parallel", "parallel", "arbitrary"),
        ),
        cost_estimate=cost,
    )(q, k, v)


def attention_ref(q, k, v):
    scale = 1.0 / math.sqrt(q.shape[-1])
    qf = q.astype(jnp.float32)
    kf = k.astype(jnp.float32)
    vf = v.astype(jnp.float32)
    s = jnp.einsum("bqd,bkd->bqk", qf, kf) * scale
    p = jax.nn.softmax(s, axis=-1)
    return jnp.einsum("bqk,bkd->bqd", p, vf)


if __name__ == "__main__":
    # Tile-aligned shapes: batch=2, seq=512, hidden=128 so the 256-wide q/kv
    # tiles give a 2x2x2 grid (multiple kv steps exercise the online softmax
    # and the pipeline has depth); D=128 keeps output stores lane-dense.
    B, S, D = 2, 512, 128
    key = jax.random.PRNGKey(0)
    kq, kk, kv = jax.random.split(key, 3)
    q = jax.random.normal(kq, (B, S, D), dtype=jnp.bfloat16)
    k = jax.random.normal(kk, (B, S, D), dtype=jnp.bfloat16)
    v = jax.random.normal(kv, (B, S, D), dtype=jnp.bfloat16)

    out = attention(q, k, v)
    jax.block_until_ready(out)

    ref = attention_ref(q, k, v)
    assert out.shape == (B, S, D)
    # bf16 MXU operands + bf16 output -> bf16 precision floor vs f32 reference.
    err = jnp.max(jnp.abs(out.astype(jnp.float32) - ref))
    assert jnp.allclose(out.astype(jnp.float32), ref, atol=3e-2, rtol=3e-2), float(err)
    print("KERNEL_OK")
</pallas_src>

<mosaic_0001>
module attributes {stable_mosaic.version = 11 : i64} {
  func.func @_flash_sdpa_kernel(%arg0: i32, %arg1: i32, %arg2: i32, %arg3: memref<1x256x128xbf16, #tpu.memory_space<vmem>>, %arg4: memref<1x256x128xbf16, #tpu.memory_space<vmem>>, %arg5: memref<1x256x128xbf16, #tpu.memory_space<vmem>>, %arg6: memref<1x256x128xbf16, #tpu.memory_space<vmem>>, %arg7: memref<256x128xbf16, #tpu.memory_space<vmem>>, %arg8: memref<256x1xf32, #tpu.memory_space<vmem>>, %arg9: memref<256x1xf32, #tpu.memory_space<vmem>>, %arg10: memref<256x128xf32, #tpu.memory_space<vmem>>) attributes {dimension_semantics = [#tpu.dimension_semantics<parallel>, #tpu.dimension_semantics<parallel>, #tpu.dimension_semantics<arbitrary>], iteration_bounds = array<i64: 2, 2, 2>, scalar_prefetch = 0 : i64, scratch_operands = 4 : i64, tpu.core_type = #tpu.core_type<tc>, window_params = [{transform_indices = @transform_0, window_bounds = array<i64: 1, 256, 128>}, {transform_indices = @transform_1, window_bounds = array<i64: 1, 256, 128>}, {transform_indices = @transform_2, window_bounds = array<i64: 1, 256, 128>}, {transform_indices = @transform_3, window_bounds = array<i64: 1, 256, 128>}]} {
    %c0_i32 = arith.constant 0 : i32
    %0 = arith.cmpi eq, %arg2, %c0_i32 : i32
    %1 = arith.extui %0 : i1 to i32
    %c0_i32_0 = arith.constant 0 : i32
    %2 = arith.cmpi ne, %1, %c0_i32_0 : i32
    scf.if %2 {
      %c0_24 = arith.constant 0 : index
      %c0_25 = arith.constant 0 : index
      %c0_26 = arith.constant 0 : index
      %35 = vector.load %arg3[%c0_24, %c0_25, %c0_26] : memref<1x256x128xbf16, #tpu.memory_space<vmem>>, vector<1x256x128xbf16>
      %36 = vector.shape_cast %35 : vector<1x256x128xbf16> to vector<256x128xbf16>
      %37 = arith.extf %36 : vector<256x128xbf16> to vector<256x128xf32>
      %cst_27 = arith.constant 0.0883883461 : f32
      %38 = vector.broadcast %cst_27 : f32 to vector<256x128xf32>
      %39 = arith.mulf %37, %38 : vector<256x128xf32>
      %40 = arith.truncf %39 : vector<256x128xf32> to vector<256x128xbf16>
      %c0_28 = arith.constant 0 : index
      %c0_29 = arith.constant 0 : index
      %41 = vector.load %arg7[%c0_28, %c0_29] : memref<256x128xbf16, #tpu.memory_space<vmem>>, vector<256x128xbf16>
      tpu.vector_store %arg7[%c0_28, %c0_29], %40 {strides = array<i32>} : memref<256x128xbf16, #tpu.memory_space<vmem>>, vector<256x128xbf16>,
      %cst_30 = arith.constant 0xFF800000 : f32
      %42 = vector.broadcast %cst_30 : f32 to vector<256x1xf32>
      %c0_31 = arith.constant 0 : index
      %c0_32 = arith.constant 0 : index
      %43 = vector.load %arg8[%c0_31, %c0_32] : memref<256x1xf32, #tpu.memory_space<vmem>>, vector<256x1xf32>
      tpu.vector_store %arg8[%c0_31, %c0_32], %42 {strides = array<i32>} : memref<256x1xf32, #tpu.memory_space<vmem>>, vector<256x1xf32>,
      %cst_33 = arith.constant 0.000000e+00 : f32
      %44 = vector.broadcast %cst_33 : f32 to vector<256x1xf32>
      %c0_34 = arith.constant 0 : index
      %c0_35 = arith.constant 0 : index
      %45 = vector.load %arg9[%c0_34, %c0_35] : memref<256x1xf32, #tpu.memory_space<vmem>>, vector<256x1xf32>
      tpu.vector_store %arg9[%c0_34, %c0_35], %44 {strides = array<i32>} : memref<256x1xf32, #tpu.memory_space<vmem>>, vector<256x1xf32>,
      %cst_36 = arith.constant 0.000000e+00 : f32
      %46 = vector.broadcast %cst_36 : f32 to vector<256x128xf32>
      %c0_37 = arith.constant 0 : index
      %c0_38 = arith.constant 0 : index
      %47 = vector.load %arg10[%c0_37, %c0_38] : memref<256x128xf32, #tpu.memory_space<vmem>>, vector<256x128xf32>
      tpu.vector_store %arg10[%c0_37, %c0_38], %46 {strides = array<i32>} : memref<256x128xf32, #tpu.memory_space<vmem>>, vector<256x128xf32>,
    } else {
    }
    %c0 = arith.constant 0 : index
    %c0_1 = arith.constant 0 : index
    %3 = vector.load %arg7[%c0, %c0_1] : memref<256x128xbf16, #tpu.memory_space<vmem>>, vector<256x128xbf16>
    %c0_2 = arith.constant 0 : index
    %c0_3 = arith.constant 0 : index
    %c0_4 = arith.constant 0 : index
    %4 = vector.load %arg4[%c0_2, %c0_3, %c0_4] : memref<1x256x128xbf16, #tpu.memory_space<vmem>>, vector<1x256x128xbf16>
    %5 = vector.shape_cast %4 : vector<1x256x128xbf16> to vector<256x128xbf16>
    %cst = arith.constant dense<0.000000e+00> : vector<256x256xf32>
    %6 = tpu.matmul %3, %5, %cst {dimension_numbers = #tpu.dot_dimension_numbers<[1], [1], [0], [0], [0, 0, 1, 0], [], []>} : vector<256x128xbf16>, vector<256x128xbf16>, vector<256x256xf32> -> vector<256x256xf32>
    %c0_5 = arith.constant 0 : index
    %c0_6 = arith.constant 0 : index
    %7 = vector.load %arg8[%c0_5, %c0_6] : memref<256x1xf32, #tpu.memory_space<vmem>>, vector<256x1xf32>
    %cst_7 = arith.constant dense<0xFF800000> : vector<256xf32>
    %8 = vector.multi_reduction <maximumf>, %6, %cst_7 [1] : vector<256x256xf32> to vector<256xf32>
    %9 = vector.shape_cast %8 : vector<256xf32> to vector<256x1xf32>
    %10 = arith.maximumf %7, %9 : vector<256x1xf32>
    %11 = arith.subf %7, %10 : vector<256x1xf32>
    %12 = math.exp %11 : vector<256x1xf32>
    %13 = vector.broadcast %10 : vector<256x1xf32> to vector<256x256xf32>
    %14 = arith.subf %6, %13 : vector<256x256xf32>
    %15 = math.exp %14 : vector<256x256xf32>
    %c0_8 = arith.constant 0 : index
    %c0_9 = arith.constant 0 : index
    %16 = vector.load %arg9[%c0_8, %c0_9] : memref<256x1xf32, #tpu.memory_space<vmem>>, vector<256x1xf32>
    %17 = arith.mulf %12, %16 : vector<256x1xf32>
    %cst_10 = arith.constant dense<0.000000e+00> : vector<256xf32>
    %18 = vector.multi_reduction <add>, %15, %cst_10 [1] : vector<256x256xf32> to vector<256xf32>
    %19 = vector.shape_cast %18 : vector<256xf32> to vector<256x1xf32>
    %20 = arith.addf %17, %19 : vector<256x1xf32>
    %c0_11 = arith.constant 0 : index
    %c0_12 = arith.constant 0 : index
    %21 = vector.load %arg9[%c0_11, %c0_12] : memref<256x1xf32, #tpu.memory_space<vmem>>, vector<256x1xf32>
    tpu.vector_store %arg9[%c0_11, %c0_12], %20 {strides = array<i32>} : memref<256x1xf32, #tpu.memory_space<vmem>>, vector<256x1xf32>,
    %c0_13 = arith.constant 0 : index
    %c0_14 = arith.constant 0 : index
    %22 = vector.load %arg10[%c0_13, %c0_14] : memref<256x128xf32, #tpu.memory_space<vmem>>, vector<256x128xf32>
    %23 = vector.broadcast %12 : vector<256x1xf32> to vector<256x128xf32>
    %24 = arith.mulf %23, %22 : vector<256x128xf32>
    %25 = arith.truncf %15 : vector<256x256xf32> to vector<256x256xbf16>
    %c0_15 = arith.constant 0 : index
    %c0_16 = arith.constant 0 : index
    %c0_17 = arith.constant 0 : index
    %26 = vector.load %arg5[%c0_15, %c0_16, %c0_17] : memref<1x256x128xbf16, #tpu.memory_space<vmem>>, vector<1x256x128xbf16>
    %27 = vector.shape_cast %26 : vector<1x256x128xbf16> to vector<256x128xbf16>
    %cst_18 = arith.constant dense<0.000000e+00> : vector<256x128xf32>
    %28 = tpu.matmul %25, %27, %cst_18 {dimension_numbers = #tpu.dot_dimension_numbers<[1], [0], [0], [1], [0, 0, 1, 1], [], []>} : vector<256x256xbf16>, vector<256x128xbf16>, vector<256x128xf32> -> vector<256x128xf32>
    %29 = arith.addf %24, %28 : vector<256x128xf32>
    %c0_19 = arith.constant 0 : index
    %c0_20 = arith.constant 0 : index
    %30 = vector.load %arg10[%c0_19, %c0_20] : memref<256x128xf32, #tpu.memory_space<vmem>>, vector<256x128xf32>
    tpu.vector_store %arg10[%c0_19, %c0_20], %29 {strides = array<i32>} : memref<256x128xf32, #tpu.memory_space<vmem>>, vector<256x128xf32>,
    %c0_21 = arith.constant 0 : index
    %c0_22 = arith.constant 0 : index
    %31 = vector.load %arg8[%c0_21, %c0_22] : memref<256x1xf32, #tpu.memory_space<vmem>>, vector<256x1xf32>
    tpu.vector_store %arg8[%c0_21, %c0_22], %10 {strides = array<i32>} : memref<256x1xf32, #tpu.memory_space<vmem>>, vector<256x1xf32>,
    %c1_i32 = arith.constant 1 : i32
    %32 = arith.cmpi eq, %arg2, %c1_i32 : i32
    %33 = arith.extui %32 : i1 to i32
    %c0_i32_23 = arith.constant 0 : i32
    %34 = arith.cmpi ne, %33, %c0_i32_23 : i32
    scf.if %34 {
      %c0_24 = arith.constant 0 : index
      %c0_25 = arith.constant 0 : index
      %35 = vector.load %arg10[%c0_24, %c0_25] : memref<256x128xf32, #tpu.memory_space<vmem>>, vector<256x128xf32>
      %c0_26 = arith.constant 0 : index
      %c0_27 = arith.constant 0 : index
      %36 = vector.load %arg9[%c0_26, %c0_27] : memref<256x1xf32, #tpu.memory_space<vmem>>, vector<256x1xf32>
      %37 = vector.broadcast %36 : vector<256x1xf32> to vector<256x128xf32>
      %38 = arith.divf %35, %37 : vector<256x128xf32>
      %39 = arith.truncf %38 : vector<256x128xf32> to vector<256x128xbf16>
      %c0_28 = arith.constant 0 : index
      %c0_29 = arith.constant 0 : index
      %c0_30 = arith.constant 0 : index
      %40 = vector.load %arg6[%c0_28, %c0_29, %c0_30] : memref<1x256x128xbf16, #tpu.memory_space<vmem>>, vector<1x256x128xbf16>
      %41 = vector.shape_cast %40 : vector<1x256x128xbf16> to vector<256x128xbf16>
      %42 = vector.shape_cast %39 : vector<256x128xbf16> to vector<1x256x128xbf16>
      tpu.vector_store %arg6[%c0_28, %c0_29, %c0_30], %42 {strides = array<i32>} : memref<1x256x128xbf16, #tpu.memory_space<vmem>>, vector<1x256x128xbf16>,
    } else {
    }
    return
  }
  func.func @transform_0(%arg0: i32, %arg1: i32, %arg2: i32) -> (i32, i32, i32) {
    %c0_i32 = arith.constant 0 : i32
    %c0_i32_0 = arith.constant 0 : i32
    return %arg0, %arg1, %c0_i32 : i32, i32, i32
  }
  func.func @transform_1(%arg0: i32, %arg1: i32, %arg2: i32) -> (i32, i32, i32) {
    %c0_i32 = arith.constant 0 : i32
    %c0_i32_0 = arith.constant 0 : i32
    return %arg0, %arg2, %c0_i32 : i32, i32, i32
  }
  func.func @transform_2(%arg0: i32, %arg1: i32, %arg2: i32) -> (i32, i32, i32) {
    %c0_i32 = arith.constant 0 : i32
    %c0_i32_0 = arith.constant 0 : i32
    return %arg0, %arg2, %c0_i32 : i32, i32, i32
  }
  func.func @transform_3(%arg0: i32, %arg1: i32, %arg2: i32) -> (i32, i32, i32) {
    %c0_i32 = arith.constant 0 : i32
    %c0_i32_0 = arith.constant 0 : i32
    return %arg0, %arg1, %c0_i32 : i32, i32, i32
  }
}

</mosaic_0001>

<llo_original>
// kernel: tpu_custom_call.1
$region0: #{tpu_custom_call.1}
  #allocation0 [shape = 'u32[]', space=smem, size = 0x4, offset = 0x4, fixed_abs, tag = 'smem constant byte address 0x4 - core index']
  #allocation1 [shape = 'u32[144,128]{1,0:T(1,128)}', space=vmem, size = 0x12000, scoped, tag = 'internal scratch']
  #allocation2 [shape = 'bf16[256,128]{1,0:T(8,128)(2,1)}', space=vmem, size = 0x10000, scoped, tag = 'scratch operand']
  #allocation3 [shape = 'f32[256,1]{1,0:T(8,128)}', space=vmem, size = 0x20000, scoped, tag = 'scratch operand']
  #allocation4 [shape = 'f32[256,1]{1,0:T(8,128)}', space=vmem, size = 0x20000, scoped, tag = 'scratch operand']
  #allocation5 [shape = 'f32[256,128]{1,0:T(8,128)}', space=vmem, size = 0x20000, scoped, tag = 'scratch operand']
  %s0 = inlined_call_operand.hbm [shape: bf16[2,512,128], index: 0, kind: input, shape index: {}]
  %s1 = inlined_call_operand.hbm [shape: bf16[2,512,128], index: 1, kind: input, shape index: {}]
  %s2 = inlined_call_operand.hbm [shape: bf16[2,512,128], index: 2, kind: input, shape index: {}]
  %s3 = inlined_call_operand.hbm [shape: bf16[2,512,128], index: 3, kind: output, shape index: {}]
  %s4 = sld [smem:[#allocation0]]
  $region65: #{tpu_custom_call.1} parent=0
    _
  %s6 = ssub.s32 1, %s4
  %s7 = scalar_select 0, %s6, %s4
  $region1: #{tpu_custom_call.1} parent=0
    #allocation6 [shape = 'u8[131072]{0}', space=vmem, size = 0x20000, scoped, tag = 'input window, operand 0']
    #allocation7 [shape = 's32[2]{0}', space=sflag, size = 0x8, scoped, tag = 'scoped memory for tpu_custom_call.1']
    #allocation8 [shape = 's32[2]{0}', space=sflag, size = 0x8, scoped, tag = 'scoped memory for tpu_custom_call.1']
    #allocation9 [shape = 'u8[131072]{0}', space=vmem, size = 0x20000, scoped, tag = 'input window, operand 1']
    #allocation10 [shape = 's32[2]{0}', space=sflag, size = 0x8, scoped, tag = 'scoped memory for tpu_custom_call.1']
    #allocation11 [shape = 'u8[131072]{0}', space=vmem, size = 0x20000, scoped, tag = 'input window, operand 2']
    #allocation12 [shape = 'u8[131072]{0}', space=vmem, size = 0x20000, scoped, tag = 'output window, operand 0']
    %8 = vsyncpa [#allocation7], 0
    %s9 = scalar_lea.sflag [#allocation7], 1
    %10 = vsyncpa %s9, 0
    %11 = vsyncpa [#allocation10], 0
    %s12 = scalar_lea.sflag [#allocation10], 1
    %13 = vsyncpa %s12, 0
    %14 = vsyncpa [#allocation8], 0
    %s15 = scalar_lea.sflag [#allocation8], 1
    %16 = vsyncpa %s15, 0
    loop: start=0, step=1, limit=10
    $region2: #{tpu_custom_call.1} parent=1 // loop_pre_header
      _
    $region3: #{tpu_custom_call.1} parent=1 // loop_header
      %s18 = sphi 0, %s22
      %p19 = scmp.ge.s32.totalorder %s18, 10
      %s25 = sphi 0, %s44
      %s26 = sphi 0, %s40
      %s27 = sphi 0, %s36
      %s28 = sphi 0, %s25
      %s29 = sphi 0, %s26
      %s30 = sphi 0, %s27
      %s31 = sphi 0, %s28
      %s32 = sphi 0, %s29
      %s33 = sphi 0, %s30
      %s49 = sphi 0, %s51
      %s52 = sphi 0, %s49
      %s53 = sphi 0, %s52
      %s69 = sphi 0, %s53
      %s77 = sphi 0, %s79
      %s80 = sphi 0, %s77
      %s81 = sphi 0, %s80
      %s97 = sphi 0, %s81
      %s105 = sphi 0, %s107
      %s108 = sphi 0, %s105
      %s109 = sphi 0, %s108
      %s125 = sphi 0, %s109
      %s133 = sphi 0, %s135
      %s136 = sphi 0, %s133
      %s137 = sphi 0, %s136
      %s153 = sphi 0, %s137
    $region4: #{tpu_custom_call.1} parent=1 // loop_header_branch
      %21 = sbr.rel (%p19) target = $region8
    $region5: #{tpu_custom_call.1} parent=1 // loop_body
      %s23 = ssub.s32 %s18, 1
      %s24 = ssub.s32 %s18, 2
      %s34 = sadd.s32 1, %s27
      %p35 = scmp.ge.s32.totalorder %s34, 2
      %s36 = scalar_select %p35, 0, %s34
      %s37 = sadd.s32 1, %s26
      %s38 = scalar_select %p35, %s37, %s26
      %p39 = scmp.ge.s32.totalorder %s38, 2
      %s40 = scalar_select %p39, 0, %s38
      %s41 = sadd.s32 1, %s25
      %s42 = scalar_select %p39, %s41, %s25
      %p43 = scmp.ge.s32.totalorder %s42, 2
      %s44 = scalar_select %p43, 0, %s42
      %s45 = ssub.s32 %s25, %s44
      %s46 = ssub.s32 %s26, %s40
      %s47 = sor.u32 %s45, %s46
      %p48 = scmp.eq.s32.totalorder %s47, 0
      %s50 = sadd.s32 %s49, 1
      %s51 = scalar_select %p48, %s49, %s50
      %p54 = pneg %p48
      %p55 = scmp.eq.s32.totalorder %s18, 7
      %p56 = por %p54, %p55
      %p57 = scmp.ne.s32.totalorder %s49, %s52
      %p58 = scmp.eq.s32.totalorder %s18, 0
      %p59 = por %p57, %p58
      %p60 = scmp.ne.s32.totalorder %s49, %s52
      %p61 = scmp.eq.s32.totalorder %s23, 7
      %p62 = por %p60, %p61
      %p63 = scmp.ne.s32.totalorder %s52, %s53
      %p64 = scmp.eq.s32.totalorder %s23, 0
      %p65 = por %p63, %p64
      %p66 = scmp.ne.s32.totalorder %s52, %s53
      %p67 = scmp.eq.s32.totalorder %s24, 7
      %p68 = por %p66, %p67
      %p70 = scmp.ne.s32.totalorder %s53, %s69
      %p71 = scmp.eq.s32.totalorder %s24, 0
      %p72 = por %p70, %p71
      %s73 = ssub.s32 %s25, %s44
      %s74 = ssub.s32 %s27, %s36
      %s75 = sor.u32 %s73, %s74
      %p76 = scmp.eq.s32.totalorder %s75, 0
      %s78 = sadd.s32 %s77, 1
      %s79 = scalar_select %p76, %s77, %s78
      %p82 = pneg %p76
      %p83 = scmp.eq.s32.totalorder %s18, 7
      %p84 = por %p82, %p83
      %p85 = scmp.ne.s32.totalorder %s77, %s80
      %p86 = scmp.eq.s32.totalorder %s18, 0
      %p87 = por %p85, %p86
      %p88 = scmp.ne.s32.totalorder %s77, %s80
      %p89 = scmp.eq.s32.totalorder %s23, 7
      %p90 = por %p88, %p89
      %p91 = scmp.ne.s32.totalorder %s80, %s81
      %p92 = scmp.eq.s32.totalorder %s23, 0
      %p93 = por %p91, %p92
      %p94 = scmp.ne.s32.totalorder %s80, %s81
      %p95 = scmp.eq.s32.totalorder %s24, 7
      %p96 = por %p94, %p95
      %p98 = scmp.ne.s32.totalorder %s81, %s97
      %p99 = scmp.eq.s32.totalorder %s24, 0
      %p100 = por %p98, %p99
      %s101 = ssub.s32 %s25, %s44
      %s102 = ssub.s32 %s27, %s36
      %s103 = sor.u32 %s101, %s102
      %p104 = scmp.eq.s32.totalorder %s103, 0
      %s106 = sadd.s32 %s105, 1
      %s107 = scalar_select %p104, %s105, %s106
      %p110 = pneg %p104
      %p111 = scmp.eq.s32.totalorder %s18, 7
      %p112 = por %p110, %p111
      %p113 = scmp.ne.s32.totalorder %s105, %s108
      %p114 = scmp.eq.s32.totalorder %s18, 0
      %p115 = por %p113, %p114
      %p116 = scmp.ne.s32.totalorder %s105, %s108
      %p117 = scmp.eq.s32.totalorder %s23, 7
      %p118 = por %p116, %p117
      %p119 = scmp.ne.s32.totalorder %s108, %s109
      %p120 = scmp.eq.s32.totalorder %s23, 0
      %p121 = por %p119, %p120
      %p122 = scmp.ne.s32.totalorder %s108, %s109
      %p123 = scmp.eq.s32.totalorder %s24, 7
      %p124 = por %p122, %p123
      %p126 = scmp.ne.s32.totalorder %s109, %s125
      %p127 = scmp.eq.s32.totalorder %s24, 0
      %p128 = por %p126, %p127
      %s129 = ssub.s32 %s25, %s44
      %s130 = ssub.s32 %s26, %s40
      %s131 = sor.u32 %s129, %s130
      %p132 = scmp.eq.s32.totalorder %s131, 0
      %s134 = sadd.s32 %s133, 1
      %s135 = scalar_select %p132, %s133, %s134
      %p138 = pneg %p132
      %p139 = scmp.eq.s32.totalorder %s18, 7
      %p140 = por %p138, %p139
      %p141 = scmp.ne.s32.totalorder %s133, %s136
      %p142 = scmp.eq.s32.totalorder %s18, 0
      %p143 = por %p141, %p142
      %p144 = scmp.ne.s32.totalorder %s133, %s136
      %p145 = scmp.eq.s32.totalorder %s23, 7
      %p146 = por %p144, %p145
      %p147 = scmp.ne.s32.totalorder %s136, %s137
      %p148 = scmp.eq.s32.totalorder %s23, 0
      %p149 = por %p147, %p148
      %p150 = scmp.ne.s32.totalorder %s136, %s137
      %p151 = scmp.eq.s32.totalorder %s24, 7
      %p152 = por %p150, %p151
      %p154 = scmp.ne.s32.totalorder %s137, %s153
      %p155 = scmp.eq.s32.totalorder %s24, 0
      %p156 = por %p154, %p155
      %p157 = scmp.le.s32.totalorder 1, %s18
      %p158 = scmp.lt.s32.totalorder %s18, 9
      %p159 = pnand %p157, %p158
      %p160 = pneg %p159
      // Predicated region
      $region9: #{tpu_custom_call.1} parent=5 // pred_check
        _
      $region10: #{tpu_custom_call.1} parent=5 // pred_check_branch
        %162 = sbr.rel (%p159) target = $region12
      $region11: #{tpu_custom_call.1} parent=5 // pred_region
        %s163 = ssub.s32 %s18, 1
      $region12: #{tpu_custom_call.1} parent=5 // pred_fallthru
        _
      %p164 = scmp.lt.s32.totalorder %s18, 8
      // Predicated region
      $region13: #{tpu_custom_call.1} parent=5 // pred_check
        %p165 = pneg %p164
      $region14: #{tpu_custom_call.1} parent=5 // pred_check_branch
        %167 = sbr.rel (%p165) target = $region16
      $region15: #{tpu_custom_call.1} parent=5 // pred_region
        // Predicated region
        $region17: #{tpu_custom_call.1} parent=15 // pred_check
          %p168 = pneg %p59
        $region18: #{tpu_custom_call.1} parent=15 // pred_check_branch
          %170 = sbr.rel (%p168) target = $region20
        $region19: #{tpu_custom_call.1} parent=15 // pred_region
          %s171 = sand.u32 %s49, 1
          %s172 = scalar_lea.sflag [#allocation7], %s171
          %s173 = sand.u32 %s49, 1
          %s174 = smul.addr %s173, 128
          %s175 = scalar_lea.vmem [#allocation6], %s174
          %s176 = smul.u32 32, %s26
          %s178 = ssub.s32 2048, 2048
          %179 = vsyncadd %s172, %s178
          %s180 = smul.addr %s25, 64
          %s181 = sadd.s32 %s176, %s180
          %s182 = smul.addr %s181, 64
          %s183 = scalar_lea.hbm %s0, %s182
          %s184 = sshll.u32 %s175, 4
          %s185 = int_to_ptr.vmem [resolvable:$true] %s184
          %190 = dma.hbm_to_vmem [thread:$0]  %s183, 2048, %s185, %s172, 64, 64, 4
        $region20: #{tpu_custom_call.1} parent=15 // pred_fallthru
          _
        // Predicated region
        $region21: #{tpu_custom_call.1} parent=15 // pred_check
          %p191 = pneg %p87
        $region22: #{tpu_custom_call.1} parent=15 // pred_check_branch
          %193 = sbr.rel (%p191) target = $region24
        $region23: #{tpu_custom_call.1} parent=15 // pred_region
          %s194 = sand.u32 %s18, 1
          %s195 = scalar_lea.sflag [#allocation10], %s194
          %s196 = sand.u32 %s77, 1
          %s197 = smul.addr %s196, 128
          %s198 = scalar_lea.vmem [#allocation9], %s197
          %s199 = smul.u32 32, %s27
          %s201 = ssub.s32 2048, 2048
          %202 = vsyncadd %s195, %s201
          %s203 = smul.addr %s25, 64
          %s204 = sadd.s32 %s199, %s203
          %s205 = smul.addr %s204, 64
          %s206 = scalar_lea.hbm %s1, %s205
          %s207 = sshll.u32 %s198, 4
          %s208 = int_to_ptr.vmem [resolvable:$true] %s207
          %213 = dma.hbm_to_vmem [thread:$0]  %s206, 2048, %s208, %s195, 64, 64, 4
        $region24: #{tpu_custom_call.1} parent=15 // pred_fallthru
          _
        // Predicated region
        $region25: #{tpu_custom_call.1} parent=15 // pred_check
          %p214 = pneg %p115
        $region26: #{tpu_custom_call.1} parent=15 // pred_check_branch
          %216 = sbr.rel (%p214) target = $region28
        $region27: #{tpu_custom_call.1} parent=15 // pred_region
          %s217 = sand.u32 %s18, 1
          %s218 = scalar_lea.sflag [#allocation10], %s217
          %s219 = sand.u32 %s105, 1
          %s220 = smul.addr %s219, 128
          %s221 = scalar_lea.vmem [#allocation11], %s220
          %s222 = smul.u32 32, %s27
          %s224 = ssub.s32 2048, 2048
          %225 = vsyncadd %s218, %s224
          %s226 = smul.addr %s25, 64
          %s227 = sadd.s32 %s222, %s226
          %s228 = smul.addr %s227, 64
          %s229 = scalar_lea.hbm %s2, %s228
          %s230 = sshll.u32 %s221, 4
          %s231 = int_to_ptr.vmem [resolvable:$true] %s230
          %236 = dma.hbm_to_vmem [thread:$0]  %s229, 2048, %s231, %s218, 64, 64, 4
        $region28: #{tpu_custom_call.1} parent=15 // pred_fallthru
          _
      $region16: #{tpu_custom_call.1} parent=5 // pred_fallthru
        _
      %p237 = scmp.le.s32.totalorder 1, %s18
      %p238 = scmp.lt.s32.totalorder %s18, 9
      %p239 = pnand %p237, %p238
      %p240 = pneg %p239
      // Predicated region
      $region29: #{tpu_custom_call.1} parent=5 // pred_check
        _
      $region30: #{tpu_custom_call.1} parent=5 // pred_check_branch
        %242 = sbr.rel (%p239) target = $region32
      $region31: #{tpu_custom_call.1} parent=5 // pred_region
        %s243 = ssub.s32 %s18, 1
        %s244 = sand.u32 %s52, 1
        %s245 = scalar_lea.sflag [#allocation7], %s244
        %s246 = sand.u32 %s52, 1
        %s247 = smul.addr %s246, 128
        %s248 = scalar_lea.vmem [#allocation6], %s247
        // Predicated region
        $region33: #{tpu_custom_call.1} parent=31 // pred_check
          %p249 = pneg %p65
        $region34: #{tpu_custom_call.1} parent=31 // pred_check_branch
          %251 = sbr.rel (%p249) target = $region36
        $region35: #{tpu_custom_call.1} parent=31 // pred_region
          %252 = dma.done %s245, 2048
        $region36: #{tpu_custom_call.1} parent=31 // pred_fallthru
          _
        %s253 = sand.u32 %s23, 1
        %s254 = scalar_lea.sflag [#allocation10], %s253
        %s255 = sand.u32 %s80, 1
        %s256 = smul.addr %s255, 128
        %s257 = scalar_lea.vmem [#allocation9], %s256
        // Predicated region
        $region37: #{tpu_custom_call.1} parent=31 // pred_check
          %p258 = pneg %p93
        $region38: #{tpu_custom_call.1} parent=31 // pred_check_branch
          %260 = sbr.rel (%p258) target = $region40
        $region39: #{tpu_custom_call.1} parent=31 // pred_region
          %261 = dma.done %s254, 2048
        $region40: #{tpu_custom_call.1} parent=31 // pred_fallthru
          _
        %s262 = sand.u32 %s23, 1
        %s263 = scalar_lea.sflag [#allocation10], %s262
        %s264 = sand.u32 %s108, 1
        %s265 = smul.addr %s264, 128
        %s266 = scalar_lea.vmem [#allocation11], %s265
        // Predicated region
        $region41: #{tpu_custom_call.1} parent=31 // pred_check
          %p267 = pneg %p121
        $region42: #{tpu_custom_call.1} parent=31 // pred_check_branch
          %269 = sbr.rel (%p267) target = $region44
        $region43: #{tpu_custom_call.1} parent=31 // pred_region
          %270 = dma.done %s263, 2048
        $region44: #{tpu_custom_call.1} parent=31 // pred_fallthru
          _
        %s271 = sand.u32 %s52, 1
        %s272 = scalar_lea.sflag [#allocation7], %s271
        %s273 = sand.u32 %s52, 1
        %s274 = smul.addr %s273, 128
        %s275 = scalar_lea.vmem [#allocation6], %s274
        %p276 = pneg %p65
        %p277 = pneg %p62
        %s278 = sand.u32 %s23, 1
        %s279 = scalar_lea.sflag [#allocation10], %s278
        %s280 = sand.u32 %s80, 1
        %s281 = smul.addr %s280, 128
        %s282 = scalar_lea.vmem [#allocation9], %s281
        %p283 = pneg %p93
        %p284 = pneg %p90
        %s285 = sand.u32 %s23, 1
        %s286 = scalar_lea.sflag [#allocation10], %s285
        %s287 = sand.u32 %s108, 1
        %s288 = smul.addr %s287, 128
        %s289 = scalar_lea.vmem [#allocation11], %s288
        %p290 = pneg %p121
        %p291 = pneg %p118
        %p292 = pneg %p149
        %p293 = pneg %p146
        %s294 = sand.u32 %s136, 1
        %s295 = scalar_lea.sflag [#allocation8], %s294
        %s296 = sand.u32 %s136, 1
        %s297 = smul.addr %s296, 128
        %s298 = scalar_lea.vmem [#allocation12], %s297
        %s299 = smul.u32 32, %s29
        %s300 = smul.u32 32, %s30
        %s301 = smul.u32 32, %s30
        %s302 = smul.u32 32, %s29
        %p304 = scmp.eq.s32.totalorder %s30, 0
        // Predicated region
        $region45: #{tpu_custom_call.1} parent=31 // pred_check
          %p305 = pneg %p304
        $region46: #{tpu_custom_call.1} parent=31 // pred_check_branch
          %307 = sbr.rel (%p305) target = $region48
        $region47: #{tpu_custom_call.1} parent=31 // pred_region
          %v308 = vld [vmem:[%s248] sm:$0xf]
          %v309 = vld [vmem:[%s248 + $0x4] sm:$0xf]
          %v310 = vld [vmem:[%s248 + $0x8] sm:$0xf]
          %v311 = vld [vmem:[%s248 + $0xc] sm:$0xf]
          %v312 = vld [vmem:[%s248 + $0x10] sm:$0xf]
          %v313 = vld [vmem:[%s248 + $0x14] sm:$0xf]
          %v314 = vld [vmem:[%s248 + $0x18] sm:$0xf]
          %v315 = vld [vmem:[%s248 + $0x1c] sm:$0xf]
          %v316 = vld [vmem:[%s248 + $0x20] sm:$0xf]
          %v317 = vld [vmem:[%s248 + $0x24] sm:$0xf]
          %v318 = vld [vmem:[%s248 + $0x28] sm:$0xf]
          %v319 = vld [vmem:[%s248 + $0x2c] sm:$0xf]
          %v320 = vld [vmem:[%s248 + $0x30] sm:$0xf]
          %v321 = vld [vmem:[%s248 + $0x34] sm:$0xf]
          %v322 = vld [vmem:[%s248 + $0x38] sm:$0xf]
          %v323 = vld [vmem:[%s248 + $0x3c] sm:$0xf]
          %v324 = vld [vmem:[%s248 + $0x40] sm:$0xf]
          %v325 = vld [vmem:[%s248 + $0x44] sm:$0xf]
          %v326 = vld [vmem:[%s248 + $0x48] sm:$0xf]
          %v327 = vld [vmem:[%s248 + $0x4c] sm:$0xf]
          %v328 = vld [vmem:[%s248 + $0x50] sm:$0xf]
          %v329 = vld [vmem:[%s248 + $0x54] sm:$0xf]
          %v330 = vld [vmem:[%s248 + $0x58] sm:$0xf]
          %v331 = vld [vmem:[%s248 + $0x5c] sm:$0xf]
          %v332 = vld [vmem:[%s248 + $0x60] sm:$0xf]
          %v333 = vld [vmem:[%s248 + $0x64] sm:$0xf]
          %v334 = vld [vmem:[%s248 + $0x68] sm:$0xf]
          %v335 = vld [vmem:[%s248 + $0x6c] sm:$0xf]
          %v336 = vld [vmem:[%s248 + $0x70] sm:$0xf]
          %v337 = vld [vmem:[%s248 + $0x74] sm:$0xf]
          %v338 = vld [vmem:[%s248 + $0x78] sm:$0xf]
          %v339 = vld [vmem:[%s248 + $0x7c] sm:$0xf]
          %v340 = vunpack.c.l.bf16 %v308
          %v341 = vunpack.c.l.bf16 %v309
          %v342 = vunpack.c.l.bf16 %v310
          %v343 = vunpack.c.l.bf16 %v311
          %v344 = vunpack.c.l.bf16 %v312
          %v345 = vunpack.c.l.bf16 %v313
          %v346 = vunpack.c.l.bf16 %v314
          %v347 = vunpack.c.l.bf16 %v315
          %v348 = vunpack.c.l.bf16 %v316
          %v349 = vunpack.c.l.bf16 %v317
          %v350 = vunpack.c.l.bf16 %v318
          %v351 = vunpack.c.l.bf16 %v319
          %v352 = vunpack.c.l.bf16 %v320
          %v353 = vunpack.c.l.bf16 %v321
          %v354 = vunpack.c.l.bf16 %v322
          %v355 = vunpack.c.l.bf16 %v323
          %v356 = vunpack.c.l.bf16 %v324
          %v357 = vunpack.c.l.bf16 %v325
          %v358 = vunpack.c.l.bf16 %v326
          %v359 = vunpack.c.l.bf16 %v327
          %v360 = vunpack.c.l.bf16 %v328
          %v361 = vunpack.c.l.bf16 %v329
          %v362 = vunpack.c.l.bf16 %v330
          %v363 = vunpack.c.l.bf16 %v331
          %v364 = vunpack.c.l.bf16 %v332
          %v365 = vunpack.c.l.bf16 %v333
          %v366 = vunpack.c.l.bf16 %v334
          %v367 = vunpack.c.l.bf16 %v335
          %v368 = vunpack.c.l.bf16 %v336
          %v369 = vunpack.c.l.bf16 %v337
          %v370 = vunpack.c.l.bf16 %v338
          %v371 = vunpack.c.l.bf16 %v339
          %v372 = vmul.f32 %v340, 0.088388346
          %v373 = vmul.f32 %v341, 0.088388346
          %v374 = vmul.f32 %v342, 0.088388346
          %v375 = vmul.f32 %v343, 0.088388346
          %v376 = vmul.f32 %v344, 0.088388346
          %v377 = vmul.f32 %v345, 0.088388346
          %v378 = vmul.f32 %v346, 0.088388346
          %v379 = vmul.f32 %v347, 0.088388346
          %v380 = vmul.f32 %v348, 0.088388346
          %v381 = vmul.f32 %v349, 0.088388346
          %v382 = vmul.f32 %v350, 0.088388346
          %v383 = vmul.f32 %v351, 0.088388346
          %v384 = vmul.f32 %v352, 0.088388346
          %v385 = vmul.f32 %v353, 0.088388346
          %v386 = vmul.f32 %v354, 0.088388346
          %v387 = vmul.f32 %v355, 0.088388346
          %v388 = vmul.f32 %v356, 0.088388346
          %v389 = vmul.f32 %v357, 0.088388346
          %v390 = vmul.f32 %v358, 0.088388346
          %v391 = vmul.f32 %v359, 0.088388346
          %v392 = vmul.f32 %v360, 0.088388346
          %v393 = vmul.f32 %v361, 0.088388346
          %v394 = vmul.f32 %v362, 0.088388346
          %v395 = vmul.f32 %v363, 0.088388346
          %v396 = vmul.f32 %v364, 0.088388346
          %v397 = vmul.f32 %v365, 0.088388346
          %v398 = vmul.f32 %v366, 0.088388346
          %v399 = vmul.f32 %v367, 0.088388346
          %v400 = vmul.f32 %v368, 0.088388346
          %v401 = vmul.f32 %v369, 0.088388346
          %v402 = vmul.f32 %v370, 0.088388346
          %v403 = vmul.f32 %v371, 0.088388346
          %v404 = vpack.c.bf16 %v373, %v372
          %v405 = vpack.c.bf16 %v375, %v374
          %v406 = vpack.c.bf16 %v377, %v376
          %v407 = vpack.c.bf16 %v379, %v378
          %v408 = vpack.c.bf16 %v381, %v380
          %v409 = vpack.c.bf16 %v383, %v382
          %v410 = vpack.c.bf16 %v385, %v384
          %v411 = vpack.c.bf16 %v387, %v386
          %v412 = vpack.c.bf16 %v389, %v388
          %v413 = vpack.c.bf16 %v391, %v390
          %v414 = vpack.c.bf16 %v393, %v392
          %v415 = vpack.c.bf16 %v395, %v394
          %v416 = vpack.c.bf16 %v397, %v396
          %v417 = vpack.c.bf16 %v399, %v398
          %v418 = vpack.c.bf16 %v401, %v400
          %v419 = vpack.c.bf16 %v403, %v402
          %v436 = vunpack.c.l.b16 %v404
          %v437 = vunpack.c.h.b16 %v404
          %v438 = vunpack.c.l.b16 %v405
          %v439 = vunpack.c.h.b16 %v405
          %v440 = vunpack.c.l.b16 %v406
          %v441 = vunpack.c.h.b16 %v406
          %v442 = vunpack.c.l.b16 %v407
          %v443 = vunpack.c.h.b16 %v407
          %v444 = vunpack.c.l.b16 %v408
          %v445 = vunpack.c.h.b16 %v408
          %v446 = vunpack.c.l.b16 %v409
          %v447 = vunpack.c.h.b16 %v409
          %v448 = vunpack.c.l.b16 %v410
          %v449 = vunpack.c.h.b16 %v410
          %v450 = vunpack.c.l.b16 %v411
          %v451 = vunpack.c.h.b16 %v411
          %v452 = vunpack.c.l.b16 %v412
          %v453 = vunpack.c.h.b16 %v412
          %v454 = vunpack.c.l.b16 %v413
          %v455 = vunpack.c.h.b16 %v413
          %v456 = vunpack.c.l.b16 %v414
          %v457 = vunpack.c.h.b16 %v414
          %v458 = vunpack.c.l.b16 %v415
          %v459 = vunpack.c.h.b16 %v415
          %v460 = vunpack.c.l.b16 %v416
          %v461 = vunpack.c.h.b16 %v416
          %v462 = vunpack.c.l.b16 %v417
          %v463 = vunpack.c.h.b16 %v417
          %v464 = vunpack.c.l.b16 %v418
          %v465 = vunpack.c.h.b16 %v418
          %v466 = vunpack.c.l.b16 %v419
          %v467 = vunpack.c.h.b16 %v419
          %v468 = vpack.c.b16 %v436, %v436
          %v469 = vpack.c.b16 %v437, %v437
          %v470 = vpack.c.b16 %v438, %v438
          %v471 = vpack.c.b16 %v439, %v439
          %v472 = vpack.c.b16 %v440, %v440
          %v473 = vpack.c.b16 %v441, %v441
          %v474 = vpack.c.b16 %v442, %v442
          %v475 = vpack.c.b16 %v443, %v443
          %v476 = vpack.c.b16 %v444, %v444
          %v477 = vpack.c.b16 %v445, %v445
          %v478 = vpack.c.b16 %v446, %v446
          %v479 = vpack.c.b16 %v447, %v447
          %v480 = vpack.c.b16 %v448, %v448
          %v481 = vpack.c.b16 %v449, %v449
          %v482 = vpack.c.b16 %v450, %v450
          %v483 = vpack.c.b16 %v451, %v451
          %v484 = vpack.c.b16 %v452, %v452
          %v485 = vpack.c.b16 %v453, %v453
          %v486 = vpack.c.b16 %v454, %v454
          %v487 = vpack.c.b16 %v455, %v455
          %v488 = vpack.c.b16 %v456, %v456
          %v489 = vpack.c.b16 %v457, %v457
          %v490 = vpack.c.b16 %v458, %v458
          %v491 = vpack.c.b16 %v459, %v459
          %v492 = vpack.c.b16 %v460, %v460
          %v493 = vpack.c.b16 %v461, %v461
          %v494 = vpack.c.b16 %v462, %v462
          %v495 = vpack.c.b16 %v463, %v463
          %v496 = vpack.c.b16 %v464, %v464
          %v497 = vpack.c.b16 %v465, %v465
          %v498 = vpack.c.b16 %v466, %v466
          %v499 = vpack.c.b16 %v467, %v467
          %532 = vst [vmem:[#allocation2] sm:$0xf] %v468
          %533 = vst [vmem:[#allocation2 + $0x4] sm:$0xf] %v469
          %534 = vst [vmem:[#allocation2 + $0x8] sm:$0xf] %v470
          %535 = vst [vmem:[#allocation2 + $0xc] sm:$0xf] %v471
          %536 = vst [vmem:[#allocation2 + $0x10] sm:$0xf] %v472
          %537 = vst [vmem:[#allocation2 + $0x14] sm:$0xf] %v473
          %538 = vst [vmem:[#allocation2 + $0x18] sm:$0xf] %v474
          %539 = vst [vmem:[#allocation2 + $0x1c] sm:$0xf] %v475
          %540 = vst [vmem:[#allocation2 + $0x20] sm:$0xf] %v476
          %541 = vst [vmem:[#allocation2 + $0x24] sm:$0xf] %v477
          %542 = vst [vmem:[#allocation2 + $0x28] sm:$0xf] %v478
          %543 = vst [vmem:[#allocation2 + $0x2c] sm:$0xf] %v479
          %544 = vst [vmem:[#allocation2 + $0x30] sm:$0xf] %v480
          %545 = vst [vmem:[#allocation2 + $0x34] sm:$0xf] %v481
          %546 = vst [vmem:[#allocation2 + $0x38] sm:$0xf] %v482
          %547 = vst [vmem:[#allocation2 + $0x3c] sm:$0xf] %v483
          %548 = vst [vmem:[#allocation2 + $0x40] sm:$0xf] %v484
          %549 = vst [vmem:[#allocation2 + $0x44] sm:$0xf] %v485
          %550 = vst [vmem:[#allocation2 + $0x48] sm:$0xf] %v486
          %551 = vst [vmem:[#allocation2 + $0x4c] sm:$0xf] %v487
          %552 = vst [vmem:[#allocation2 + $0x50] sm:$0xf] %v488
          %553 = vst [vmem:[#allocation2 + $0x54] sm:$0xf] %v489
          %554 = vst [vmem:[#allocation2 + $0x58] sm:$0xf] %v490
          %555 = vst [vmem:[#allocation2 + $0x5c] sm:$0xf] %v491
          %556 = vst [vmem:[#allocation2 + $0x60] sm:$0xf] %v492
          %557 = vst [vmem:[#allocation2 + $0x64] sm:$0xf] %v493
          %558 = vst [vmem:[#allocation2 + $0x68] sm:$0xf] %v494
          %559 = vst [vmem:[#allocation2 + $0x6c] sm:$0xf] %v495
          %560 = vst [vmem:[#allocation2 + $0x70] sm:$0xf] %v496
          %561 = vst [vmem:[#allocation2 + $0x74] sm:$0xf] %v497
          %562 = vst [vmem:[#allocation2 + $0x78] sm:$0xf] %v498
          %563 = vst [vmem:[#allocation2 + $0x7c] sm:$0xf] %v499
          %vm564 = vcmask 7168
          %565 = vst.msk [vmem:[#allocation3] sm:$0xff] %vm564, -inf
          %566 = vst.msk [vmem:[#allocation3 + $0x8] sm:$0xff] %vm564, -inf
          %567 = vst.msk [vmem:[#allocation3 + $0x10] sm:$0xff] %vm564, -inf
          %568 = vst.msk [vmem:[#allocation3 + $0x18] sm:$0xff] %vm564, -inf
          %569 = vst.msk [vmem:[#allocation3 + $0x20] sm:$0xff] %vm564, -inf
          %570 = vst.msk [vmem:[#allocation3 + $0x28] sm:$0xff] %vm564, -inf
          %571 = vst.msk [vmem:[#allocation3 + $0x30] sm:$0xff] %vm564, -inf
          %572 = vst.msk [vmem:[#allocation3 + $0x38] sm:$0xff] %vm564, -inf
          %573 = vst.msk [vmem:[#allocation3 + $0x40] sm:$0xff] %vm564, -inf
          %574 = vst.msk [vmem:[#allocation3 + $0x48] sm:$0xff] %vm564, -inf
          %575 = vst.msk [vmem:[#allocation3 + $0x50] sm:$0xff] %vm564, -inf
          %576 = vst.msk [vmem:[#allocation3 + $0x58] sm:$0xff] %vm564, -inf
          %577 = vst.msk [vmem:[#allocation3 + $0x60] sm:$0xff] %vm564, -inf
          %578 = vst.msk [vmem:[#allocation3 + $0x68] sm:$0xff] %vm564, -inf
          %579 = vst.msk [vmem:[#allocation3 + $0x70] sm:$0xff] %vm564, -inf
          %580 = vst.msk [vmem:[#allocation3 + $0x78] sm:$0xff] %vm564, -inf
          %581 = vst.msk [vmem:[#allocation3 + $0x80] sm:$0xff] %vm564, -inf
          %582 = vst.msk [vmem:[#allocation3 + $0x88] sm:$0xff] %vm564, -inf
          %583 = vst.msk [vmem:[#allocation3 + $0x90] sm:$0xff] %vm564, -inf
          %584 = vst.msk [vmem:[#allocation3 + $0x98] sm:$0xff] %vm564, -inf
          %585 = vst.msk [vmem:[#allocation3 + $0xa0] sm:$0xff] %vm564, -inf
          %586 = vst.msk [vmem:[#allocation3 + $0xa8] sm:$0xff] %vm564, -inf
          %587 = vst.msk [vmem:[#allocation3 + $0xb0] sm:$0xff] %vm564, -inf
          %588 = vst.msk [vmem:[#allocation3 + $0xb8] sm:$0xff] %vm564, -inf
          %589 = vst.msk [vmem:[#allocation3 + $0xc0] sm:$0xff] %vm564, -inf
          %590 = vst.msk [vmem:[#allocation3 + $0xc8] sm:$0xff] %vm564, -inf
          %591 = vst.msk [vmem:[#allocation3 + $0xd0] sm:$0xff] %vm564, -inf
          %592 = vst.msk [vmem:[#allocation3 + $0xd8] sm:$0xff] %vm564, -inf
          %593 = vst.msk [vmem:[#allocation3 + $0xe0] sm:$0xff] %vm564, -inf
          %594 = vst.msk [vmem:[#allocation3 + $0xe8] sm:$0xff] %vm564, -inf
          %595 = vst.msk [vmem:[#allocation3 + $0xf0] sm:$0xff] %vm564, -inf
          %596 = vst.msk [vmem:[#allocation3 + $0xf8] sm:$0xff] %vm564, -inf
          %597 = vst.msk [vmem:[#allocation4] sm:$0xff] %vm564, 0.0
          %598 = vst.msk [vmem:[#allocation4 + $0x8] sm:$0xff] %vm564, 0.0
          %599 = vst.msk [vmem:[#allocation4 + $0x10] sm:$0xff] %vm564, 0.0
          %600 = vst.msk [vmem:[#allocation4 + $0x18] sm:$0xff] %vm564, 0.0
          %601 = vst.msk [vmem:[#allocation4 + $0x20] sm:$0xff] %vm564, 0.0
          %602 = vst.msk [vmem:[#allocation4 + $0x28] sm:$0xff] %vm564, 0.0
          %603 = vst.msk [vmem:[#allocation4 + $0x30] sm:$0xff] %vm564, 0.0
          %604 = vst.msk [vmem:[#allocation4 + $0x38] sm:$0xff] %vm564, 0.0
          %605 = vst.msk [vmem:[#allocation4 + $0x40] sm:$0xff] %vm564, 0.0
          %606 = vst.msk [vmem:[#allocation4 + $0x48] sm:$0xff] %vm564, 0.0
          %607 = vst.msk [vmem:[#allocation4 + $0x50] sm:$0xff] %vm564, 0.0
          %608 = vst.msk [vmem:[#allocation4 + $0x58] sm:$0xff] %vm564, 0.0
          %609 = vst.msk [vmem:[#allocation4 + $0x60] sm:$0xff] %vm564, 0.0
          %610 = vst.msk [vmem:[#allocation4 + $0x68] sm:$0xff] %vm564, 0.0
          %611 = vst.msk [vmem:[#allocation4 + $0x70] sm:$0xff] %vm564, 0.0
          %612 = vst.msk [vmem:[#allocation4 + $0x78] sm:$0xff] %vm564, 0.0
          %613 = vst.msk [vmem:[#allocation4 + $0x80] sm:$0xff] %vm564, 0.0
          %614 = vst.msk [vmem:[#allocation4 + $0x88] sm:$0xff] %vm564, 0.0
          %615 = vst.msk [vmem:[#allocation4 + $0x90] sm:$0xff] %vm564, 0.0
          %616 = vst.msk [vmem:[#allocation4 + $0x98] sm:$0xff] %vm564, 0.0
          %617 = vst.msk [vmem:[#allocation4 + $0xa0] sm:$0xff] %vm564, 0.0
          %618 = vst.msk [vmem:[#allocation4 + $0xa8] sm:$0xff] %vm564, 0.0
          %619 = vst.msk [vmem:[#allocation4 + $0xb0] sm:$0xff] %vm564, 0.0
          %620 = vst.msk [vmem:[#allocation4 + $0xb8] sm:$0xff] %vm564, 0.0
          %621 = vst.msk [vmem:[#allocation4 + $0xc0] sm:$0xff] %vm564, 0.0
          %622 = vst.msk [vmem:[#allocation4 + $0xc8] sm:$0xff] %vm564, 0.0
          %623 = vst.msk [vmem:[#allocation4 + $0xd0] sm:$0xff] %vm564, 0.0
          %624 = vst.msk [vmem:[#allocation4 + $0xd8] sm:$0xff] %vm564, 0.0
          %625 = vst.msk [vmem:[#allocation4 + $0xe0] sm:$0xff] %vm564, 0.0
          %626 = vst.msk [vmem:[#allocation4 + $0xe8] sm:$0xff] %vm564, 0.0
          %627 = vst.msk [vmem:[#allocation4 + $0xf0] sm:$0xff] %vm564, 0.0
          %628 = vst.msk [vmem:[#allocation4 + $0xf8] sm:$0xff] %vm564, 0.0
          %629 = vst [vmem:[#allocation5] sm:$0xff] 0.0
          %630 = vst [vmem:[#allocation5 + $0x8] sm:$0xff] 0.0
          %631 = vst [vmem:[#allocation5 + $0x10] sm:$0xff] 0.0
          %632 = vst [vmem:[#allocation5 + $0x18] sm:$0xff] 0.0
          %633 = vst [vmem:[#allocation5 + $0x20] sm:$0xff] 0.0
          %634 = vst [vmem:[#allocation5 + $0x28] sm:$0xff] 0.0
          %635 = vst [vmem:[#allocation5 + $0x30] sm:$0xff] 0.0
          %636 = vst [vmem:[#allocation5 + $0x38] sm:$0xff] 0.0
          %637 = vst [vmem:[#allocation5 + $0x40] sm:$0xff] 0.0
          %638 = vst [vmem:[#allocation5 + $0x48] sm:$0xff] 0.0
          %639 = vst [vmem:[#allocation5 + $0x50] sm:$0xff] 0.0
          %640 = vst [vmem:[#allocation5 + $0x58] sm:$0xff] 0.0
          %641 = vst [vmem:[#allocation5 + $0x60] sm:$0xff] 0.0
          %642 = vst [vmem:[#allocation5 + $0x68] sm:$0xff] 0.0
          %643 = vst [vmem:[#allocation5 + $0x70] sm:$0xff] 0.0
          %644 = vst [vmem:[#allocation5 + $0x78] sm:$0xff] 0.0
          %645 = vst [vmem:[#allocation5 + $0x80] sm:$0xff] 0.0
          %646 = vst [vmem:[#allocation5 + $0x88] sm:$0xff] 0.0
          %647 = vst [vmem:[#allocation5 + $0x90] sm:$0xff] 0.0
          %648 = vst [vmem:[#allocation5 + $0x98] sm:$0xff] 0.0
          %649 = vst [vmem:[#allocation5 + $0xa0] sm:$0xff] 0.0
          %650 = vst [vmem:[#allocation5 + $0xa8] sm:$0xff] 0.0
          %651 = vst [vmem:[#allocation5 + $0xb0] sm:$0xff] 0.0
          %652 = vst [vmem:[#allocation5 + $0xb8] sm:$0xff] 0.0
          %653 = vst [vmem:[#allocation5 + $0xc0] sm:$0xff] 0.0
          %654 = vst [vmem:[#allocation5 + $0xc8] sm:$0xff] 0.0
          %655 = vst [vmem:[#allocation5 + $0xd0] sm:$0xff] 0.0
          %656 = vst [vmem:[#allocation5 + $0xd8] sm:$0xff] 0.0
          %657 = vst [vmem:[#allocation5 + $0xe0] sm:$0xff] 0.0
          %658 = vst [vmem:[#allocation5 + $0xe8] sm:$0xff] 0.0
          %659 = vst [vmem:[#allocation5 + $0xf0] sm:$0xff] 0.0
          %660 = vst [vmem:[#allocation5 + $0xf8] sm:$0xff] 0.0
        $region48: #{tpu_custom_call.1} parent=31 // pred_fallthru
          _
        %v661 = vld [vmem:[#allocation2] sm:$0xf]
        %v662 = vld [vmem:[#allocation2 + $0x4] sm:$0xf]
        %v663 = vld [vmem:[#allocation2 + $0x8] sm:$0xf]
        %v664 = vld [vmem:[#allocation2 + $0xc] sm:$0xf]
        %v665 = vld [vmem:[#allocation2 + $0x10] sm:$0xf]
        %v666 = vld [vmem:[#allocation2 + $0x14] sm:$0xf]
        %v667 = vld [vmem:[#allocation2 + $0x18] sm:$0xf]
        %v668 = vld [vmem:[#allocation2 + $0x1c] sm:$0xf]
        %v669 = vld [vmem:[#allocation2 + $0x20] sm:$0xf]
        %v670 = vld [vmem:[#allocation2 + $0x24] sm:$0xf]
        %v671 = vld [vmem:[#allocation2 + $0x28] sm:$0xf]
        %v672 = vld [vmem:[#allocation2 + $0x2c] sm:$0xf]
        %v673 = vld [vmem:[#allocation2 + $0x30] sm:$0xf]
        %v674 = vld [vmem:[#allocation2 + $0x34] sm:$0xf]
        %v675 = vld [vmem:[#allocation2 + $0x38] sm:$0xf]
        %v676 = vld [vmem:[#allocation2 + $0x3c] sm:$0xf]
        %v677 = vld [vmem:[#allocation2 + $0x40] sm:$0xf]
        %v678 = vld [vmem:[#allocation2 + $0x44] sm:$0xf]
        %v679 = vld [vmem:[#allocation2 + $0x48] sm:$0xf]
        %v680 = vld [vmem:[#allocation2 + $0x4c] sm:$0xf]
        %v681 = vld [vmem:[#allocation2 + $0x50] sm:$0xf]
        %v682 = vld [vmem:[#allocation2 + $0x54] sm:$0xf]
        %v683 = vld [vmem:[#allocation2 + $0x58] sm:$0xf]
        %v684 = vld [vmem:[#allocation2 + $0x5c] sm:$0xf]
        %v685 = vld [vmem:[#allocation2 + $0x60] sm:$0xf]
        %v686 = vld [vmem:[#allocation2 + $0x64] sm:$0xf]
        %v687 = vld [vmem:[#allocation2 + $0x68] sm:$0xf]
        %v688 = vld [vmem:[#allocation2 + $0x6c] sm:$0xf]
        %v689 = vld [vmem:[#allocation2 + $0x70] sm:$0xf]
        %v690 = vld [vmem:[#allocation2 + $0x74] sm:$0xf]
        %v691 = vld [vmem:[#allocation2 + $0x78] sm:$0xf]
        %v692 = vld [vmem:[#allocation2 + $0x7c] sm:$0xf]
        %v693 = vld [vmem:[%s257] sm:$0xf]
        %v694 = vld [vmem:[%s257 + $0x4] sm:$0xf]
        %v695 = vld [vmem:[%s257 + $0x8] sm:$0xf]
        %v696 = vld [vmem:[%s257 + $0xc] sm:$0xf]
        %v697 = vld [vmem:[%s257 + $0x10] sm:$0xf]
        %v698 = vld [vmem:[%s257 + $0x14] sm:$0xf]
        %v699 = vld [vmem:[%s257 + $0x18] sm:$0xf]
        %v700 = vld [vmem:[%s257 + $0x1c] sm:$0xf]
        %v701 = vld [vmem:[%s257 + $0x20] sm:$0xf]
        %v702 = vld [vmem:[%s257 + $0x24] sm:$0xf]
        %v703 = vld [vmem:[%s257 + $0x28] sm:$0xf]
        %v704 = vld [vmem:[%s257 + $0x2c] sm:$0xf]
        %v705 = vld [vmem:[%s257 + $0x30] sm:$0xf]
        %v706 = vld [vmem:[%s257 + $0x34] sm:$0xf]
        %v707 = vld [vmem:[%s257 + $0x38] sm:$0xf]
        %v708 = vld [vmem:[%s257 + $0x3c] sm:$0xf]
        %v709 = vld [vmem:[%s257 + $0x40] sm:$0xf]
        %v710 = vld [vmem:[%s257 + $0x44] sm:$0xf]
        %v711 = vld [vmem:[%s257 + $0x48] sm:$0xf]
        %v712 = vld [vmem:[%s257 + $0x4c] sm:$0xf]
        %v713 = vld [vmem:[%s257 + $0x50] sm:$0xf]
        %v714 = vld [vmem:[%s257 + $0x54] sm:$0xf]
        %v715 = vld [vmem:[%s257 + $0x58] sm:$0xf]
        %v716 = vld [vmem:[%s257 + $0x5c] sm:$0xf]
        %v717 = vld [vmem:[%s257 + $0x60] sm:$0xf]
        %v718 = vld [vmem:[%s257 + $0x64] sm:$0xf]
        %v719 = vld [vmem:[%s257 + $0x68] sm:$0xf]
        %v720 = vld [vmem:[%s257 + $0x6c] sm:$0xf]
        %v721 = vld [vmem:[%s257 + $0x70] sm:$0xf]
        %v722 = vld [vmem:[%s257 + $0x74] sm:$0xf]
        %v723 = vld [vmem:[%s257 + $0x78] sm:$0xf]
        %v724 = vld [vmem:[%s257 + $0x7c] sm:$0xf]
        %v757 = vunpack.c.l.b16 %v661
        %v758 = vunpack.c.l.b16 %v662
        %v759 = vunpack.c.l.b16 %v663
        %v760 = vunpack.c.l.b16 %v664
        %v761 = vunpack.c.l.b16 %v665
        %v762 = vunpack.c.l.b16 %v666
        %v763 = vunpack.c.l.b16 %v667
        %v764 = vunpack.c.l.b16 %v668
        %v765 = vunpack.c.l.b16 %v669
        %v766 = vunpack.c.l.b16 %v670
        %v767 = vunpack.c.l.b16 %v671
        %v768 = vunpack.c.l.b16 %v672
        %v769 = vunpack.c.l.b16 %v673
        %v770 = vunpack.c.l.b16 %v674
        %v771 = vunpack.c.l.b16 %v675
        %v772 = vunpack.c.l.b16 %v676
        %v773 = vunpack.c.l.b16 %v677
        %v774 = vunpack.c.l.b16 %v678
        %v775 = vunpack.c.l.b16 %v679
        %v776 = vunpack.c.l.b16 %v680
        %v777 = vunpack.c.l.b16 %v681
        %v778 = vunpack.c.l.b16 %v682
        %v779 = vunpack.c.l.b16 %v683
        %v780 = vunpack.c.l.b16 %v684
        %v781 = vunpack.c.l.b16 %v685
        %v782 = vunpack.c.l.b16 %v686
        %v783 = vunpack.c.l.b16 %v687
        %v784 = vunpack.c.l.b16 %v688
        %v785 = vunpack.c.l.b16 %v689
        %v786 = vunpack.c.l.b16 %v690
        %v787 = vunpack.c.l.b16 %v691
        %v788 = vunpack.c.l.b16 %v692
        %v789 = vpack.c.b16 %v758, %v757
        %v790 = vpack.c.b16 %v760, %v759
        %v791 = vpack.c.b16 %v762, %v761
        %v792 = vpack.c.b16 %v764, %v763
        %v793 = vpack.c.b16 %v766, %v765
        %v794 = vpack.c.b16 %v768, %v767
        %v795 = vpack.c.b16 %v770, %v769
        %v796 = vpack.c.b16 %v772, %v771
        %v797 = vpack.c.b16 %v774, %v773
        %v798 = vpack.c.b16 %v776, %v775
        %v799 = vpack.c.b16 %v778, %v777
        %v800 = vpack.c.b16 %v780, %v779
        %v801 = vpack.c.b16 %v782, %v781
        %v802 = vpack.c.b16 %v784, %v783
        %v803 = vpack.c.b16 %v786, %v785
        %v804 = vpack.c.b16 %v788, %v787
        %v853 = vunpack.c.l.b16 %v693
        %v854 = vunpack.c.l.b16 %v694
        %v855 = vunpack.c.l.b16 %v695
        %v856 = vunpack.c.l.b16 %v696
        %v857 = vunpack.c.l.b16 %v697
        %v858 = vunpack.c.l.b16 %v698
        %v859 = vunpack.c.l.b16 %v699
        %v860 = vunpack.c.l.b16 %v700
        %v861 = vunpack.c.l.b16 %v701
        %v862 = vunpack.c.l.b16 %v702
        %v863 = vunpack.c.l.b16 %v703
        %v864 = vunpack.c.l.b16 %v704
        %v865 = vunpack.c.l.b16 %v705
        %v866 = vunpack.c.l.b16 %v706
        %v867 = vunpack.c.l.b16 %v707
        %v868 = vunpack.c.l.b16 %v708
        %v869 = vunpack.c.l.b16 %v709
        %v870 = vunpack.c.l.b16 %v710
        %v871 = vunpack.c.l.b16 %v711
        %v872 = vunpack.c.l.b16 %v712
        %v873 = vunpack.c.l.b16 %v713
        %v874 = vunpack.c.l.b16 %v714
        %v875 = vunpack.c.l.b16 %v715
        %v876 = vunpack.c.l.b16 %v716
        %v877 = vunpack.c.l.b16 %v717
        %v878 = vunpack.c.l.b16 %v718
        %v879 = vunpack.c.l.b16 %v719
        %v880 = vunpack.c.l.b16 %v720
        %v881 = vunpack.c.l.b16 %v721
        %v882 = vunpack.c.l.b16 %v722
        %v883 = vunpack.c.l.b16 %v723
        %v884 = vunpack.c.l.b16 %v724
        %v885 = vpack.c.b16 %v854, %v853
        %v886 = vpack.c.b16 %v856, %v855
        %v887 = vpack.c.b16 %v858, %v857
        %v888 = vpack.c.b16 %v860, %v859
        %v889 = vpack.c.b16 %v862, %v861
        %v890 = vpack.c.b16 %v864, %v863
        %v891 = vpack.c.b16 %v866, %v865
        %v892 = vpack.c.b16 %v868, %v867
        %v893 = vpack.c.b16 %v870, %v869
        %v894 = vpack.c.b16 %v872, %v871
        %v895 = vpack.c.b16 %v874, %v873
        %v896 = vpack.c.b16 %v876, %v875
        %v897 = vpack.c.b16 %v878, %v877
        %v898 = vpack.c.b16 %v880, %v879
        %v899 = vpack.c.b16 %v882, %v881
        %v900 = vpack.c.b16 %v884, %v883
        %917 = vmatprep.subr.bf16.mxu0 0
        %918 = vmatpush1.bf16.xpose.msra.mxu0 %v892
        %919 = vmatprep.subr.bf16.mxu0 0
        %920 = vmatpush1.bf16.xpose.msra.mxu0 %v891
        %921 = vmatprep.subr.bf16.mxu0 0
        %922 = vmatpush1.bf16.xpose.msra.mxu0 %v890
        %923 = vmatprep.subr.bf16.mxu0 0
        %924 = vmatpush1.bf16.xpose.msra.mxu0 %v889
        %925 = vmatprep.subr.bf16.mxu0 0
        %926 = vmatpush1.bf16.xpose.msra.mxu0 %v888
        %927 = vmatprep.subr.bf16.mxu0 0
        %928 = vmatpush1.bf16.xpose.msra.mxu0 %v887
        %929 = vmatprep.subr.bf16.mxu0 0
        %930 = vmatpush1.bf16.xpose.msra.mxu0 %v886
        %931 = vmatprep.subr.bf16.mxu0 0
        %932 = vmatpush1.bf16.xpose.msra.mxu0 %v885
        %933 = vmatprep.subr.bf16.mxu0 0
        %934 = vmatpush2.bf16.xpose.msra.mxu0 %v900
        %935 = vmatprep.subr.bf16.mxu0 0
        %936 = vmatpush2.bf16.xpose.msra.mxu0 %v899
        %937 = vmatprep.subr.bf16.mxu0 0
        %938 = vmatpush2.bf16.xpose.msra.mxu0 %v898
        %939 = vmatprep.subr.bf16.mxu0 0
        %940 = vmatpush2.bf16.xpose.msra.mxu0 %v897
        %941 = vmatprep.subr.bf16.mxu0 0
        %942 = vmatpush2.bf16.xpose.msra.mxu0 %v896
        %943 = vmatprep.subr.bf16.mxu0 0
        %944 = vmatpush2.bf16.xpose.msra.mxu0 %v895
        %945 = vmatprep.subr.bf16.mxu0 0
        %946 = vmatpush2.bf16.xpose.msra.mxu0 %v894
        %947 = vmatprep.subr.bf16.mxu0 0
        %948 = vmatpush2.bf16.xpose.msra.mxu0 %v893
        %949 = vmatprep.mubr.bf16.mxu0 0
        %950 = vmatmul.mubr.bf16.gmra.mxu0 %v789
        %v951 = vpop.f32.mrf.mxu0
        %v952 = vadd.f32 0.0, %v951
        %v953 = vpop.f32.mrf.mxu0
        %v954 = vadd.f32 0.0, %v953
        %v955 = vpop.f32.mrf.mxu0
        %v956 = vadd.f32 0.0, %v955
        %v957 = vpop.f32.mrf.mxu0
        %v958 = vadd.f32 0.0, %v957
        %959 = vmatprep.mubr.bf16.mxu0 0
        %960 = vmatmul.mubr.bf16.gmra.mxu0 %v790
        %v961 = vpop.f32.mrf.mxu0
        %v962 = vadd.f32 0.0, %v961
        %v963 = vpop.f32.mrf.mxu0
        %v964 = vadd.f32 0.0, %v963
        %v965 = vpop.f32.mrf.mxu0
        %v966 = vadd.f32 0.0, %v965
        %v967 = vpop.f32.mrf.mxu0
        %v968 = vadd.f32 0.0, %v967
        %969 = vmatprep.mubr.bf16.mxu0 0
        %970 = vmatmul.mubr.bf16.gmra.mxu0 %v791
        %v971 = vpop.f32.mrf.mxu0
        %v972 = vadd.f32 0.0, %v971
        %v973 = vpop.f32.mrf.mxu0
        %v974 = vadd.f32 0.0, %v973
        %v975 = vpop.f32.mrf.mxu0
        %v976 = vadd.f32 0.0, %v975
        %v977 = vpop.f32.mrf.mxu0
        %v978 = vadd.f32 0.0, %v977
        %979 = vmatprep.mubr.bf16.mxu0 0
        %980 = vmatmul.mubr.bf16.gmra.mxu0 %v792
        %v981 = vpop.f32.mrf.mxu0
        %v982 = vadd.f32 0.0, %v981
        %v983 = vpop.f32.mrf.mxu0
        %v984 = vadd.f32 0.0, %v983
        %v985 = vpop.f32.mrf.mxu0
        %v986 = vadd.f32 0.0, %v985
        %v987 = vpop.f32.mrf.mxu0
        %v988 = vadd.f32 0.0, %v987
        %989 = vmatprep.mubr.bf16.mxu0 0
        %990 = vmatmul.mubr.bf16.gmra.mxu0 %v793
        %v991 = vpop.f32.mrf.mxu0
        %v992 = vadd.f32 0.0, %v991
        %v993 = vpop.f32.mrf.mxu0
        %v994 = vadd.f32 0.0, %v993
        %v995 = vpop.f32.mrf.mxu0
        %v996 = vadd.f32 0.0, %v995
        %v997 = vpop.f32.mrf.mxu0
        %v998 = vadd.f32 0.0, %v997
        %999 = vmatprep.mubr.bf16.mxu0 0
        %1000 = vmatmul.mubr.bf16.gmra.mxu0 %v794
        %v1001 = vpop.f32.mrf.mxu0
        %v1002 = vadd.f32 0.0, %v1001
        %v1003 = vpop.f32.mrf.mxu0
        %v1004 = vadd.f32 0.0, %v1003
        %v1005 = vpop.f32.mrf.mxu0
        %v1006 = vadd.f32 0.0, %v1005
        %v1007 = vpop.f32.mrf.mxu0
        %v1008 = vadd.f32 0.0, %v1007
        %1009 = vmatprep.mubr.bf16.mxu0 0
        %1010 = vmatmul.mubr.bf16.gmra.mxu0 %v795
        %v1011 = vpop.f32.mrf.mxu0
        %v1012 = vadd.f32 0.0, %v1011
        %v1013 = vpop.f32.mrf.mxu0
        %v1014 = vadd.f32 0.0, %v1013
        %v1015 = vpop.f32.mrf.mxu0
        %v1016 = vadd.f32 0.0, %v1015
        %v1017 = vpop.f32.mrf.mxu0
        %v1018 = vadd.f32 0.0, %v1017
        %1019 = vmatprep.mubr.bf16.mxu0 0
        %1020 = vmatmul.mubr.bf16.gmra.mxu0 %v796
        %v1021 = vpop.f32.mrf.mxu0
        %v1022 = vadd.f32 0.0, %v1021
        %v1023 = vpop.f32.mrf.mxu0
        %v1024 = vadd.f32 0.0, %v1023
        %v1025 = vpop.f32.mrf.mxu0
        %v1026 = vadd.f32 0.0, %v1025
        %v1027 = vpop.f32.mrf.mxu0
        %v1028 = vadd.f32 0.0, %v1027
        %1029 = vmatprep.mubr.bf16.mxu0 0
        %1030 = vmatmul.mubr.bf16.gmra.mxu0 %v797
        %v1031 = vpop.f32.mrf.mxu0
        %v1032 = vadd.f32 0.0, %v1031
        %v1033 = vpop.f32.mrf.mxu0
        %v1034 = vadd.f32 0.0, %v1033
        %v1035 = vpop.f32.mrf.mxu0
        %v1036 = vadd.f32 0.0, %v1035
        %v1037 = vpop.f32.mrf.mxu0
        %v1038 = vadd.f32 0.0, %v1037
        %1039 = vmatprep.mubr.bf16.mxu0 0
        %1040 = vmatmul.mubr.bf16.gmra.mxu0 %v798
        %v1041 = vpop.f32.mrf.mxu0
        %v1042 = vadd.f32 0.0, %v1041
        %v1043 = vpop.f32.mrf.mxu0
        %v1044 = vadd.f32 0.0, %v1043
        %v1045 = vpop.f32.mrf.mxu0
        %v1046 = vadd.f32 0.0, %v1045
        %v1047 = vpop.f32.mrf.mxu0
        %v1048 = vadd.f32 0.0, %v1047
        %1049 = vmatprep.mubr.bf16.mxu0 0
        %1050 = vmatmul.mubr.bf16.gmra.mxu0 %v799
        %v1051 = vpop.f32.mrf.mxu0
        %v1052 = vadd.f32 0.0, %v1051
        %v1053 = vpop.f32.mrf.mxu0
        %v1054 = vadd.f32 0.0, %v1053
        %v1055 = vpop.f32.mrf.mxu0
        %v1056 = vadd.f32 0.0, %v1055
        %v1057 = vpop.f32.mrf.mxu0
        %v1058 = vadd.f32 0.0, %v1057
        %1059 = vmatprep.mubr.bf16.mxu0 0
        %1060 = vmatmul.mubr.bf16.gmra.mxu0 %v800
        %v1061 = vpop.f32.mrf.mxu0
        %v1062 = vadd.f32 0.0, %v1061
        %v1063 = vpop.f32.mrf.mxu0
        %v1064 = vadd.f32 0.0, %v1063
        %v1065 = vpop.f32.mrf.mxu0
        %v1066 = vadd.f32 0.0, %v1065
        %v1067 = vpop.f32.mrf.mxu0
        %v1068 = vadd.f32 0.0, %v1067
        %1069 = vmatprep.mubr.bf16.mxu0 0
        %1070 = vmatmul.mubr.bf16.gmra.mxu0 %v801
        %v1071 = vpop.f32.mrf.mxu0
        %v1072 = vadd.f32 0.0, %v1071
        %v1073 = vpop.f32.mrf.mxu0
        %v1074 = vadd.f32 0.0, %v1073
        %v1075 = vpop.f32.mrf.mxu0
        %v1076 = vadd.f32 0.0, %v1075
        %v1077 = vpop.f32.mrf.mxu0
        %v1078 = vadd.f32 0.0, %v1077
        %1079 = vmatprep.mubr.bf16.mxu0 0
        %1080 = vmatmul.mubr.bf16.gmra.mxu0 %v802
        %v1081 = vpop.f32.mrf.mxu0
        %v1082 = vadd.f32 0.0, %v1081
        %v1083 = vpop.f32.mrf.mxu0
        %v1084 = vadd.f32 0.0, %v1083
        %v1085 = vpop.f32.mrf.mxu0
        %v1086 = vadd.f32 0.0, %v1085
        %v1087 = vpop.f32.mrf.mxu0
        %v1088 = vadd.f32 0.0, %v1087
        %1089 = vmatprep.mubr.bf16.mxu0 0
        %1090 = vmatmul.mubr.bf16.gmra.mxu0 %v803
        %v1091 = vpop.f32.mrf.mxu0
        %v1092 = vadd.f32 0.0, %v1091
        %v1093 = vpop.f32.mrf.mxu0
        %v1094 = vadd.f32 0.0, %v1093
        %v1095 = vpop.f32.mrf.mxu0
        %v1096 = vadd.f32 0.0, %v1095
        %v1097 = vpop.f32.mrf.mxu0
        %v1098 = vadd.f32 0.0, %v1097
        %1099 = vmatprep.mubr.bf16.mxu0 0
        %1100 = vmatmul.mubr.bf16.gmra.mxu0 %v804
        %v1101 = vpop.f32.mrf.mxu0
        %v1102 = vadd.f32 0.0, %v1101
        %v1103 = vpop.f32.mrf.mxu0
        %v1104 = vadd.f32 0.0, %v1103
        %v1105 = vpop.f32.mrf.mxu0
        %v1106 = vadd.f32 0.0, %v1105
        %v1107 = vpop.f32.mrf.mxu0
        %v1108 = vadd.f32 0.0, %v1107
        %1109 = vdwg.mxu0
        %v1110 = vld [vmem:[#allocation3] sm:$0xff]
        %v1111 = vld [vmem:[#allocation3 + $0x8] sm:$0xff]
        %v1112 = vld [vmem:[#allocation3 + $0x10] sm:$0xff]
        %v1113 = vld [vmem:[#allocation3 + $0x18] sm:$0xff]
        %v1114 = vld [vmem:[#allocation3 + $0x20] sm:$0xff]
        %v1115 = vld [vmem:[#allocation3 + $0x28] sm:$0xff]
        %v1116 = vld [vmem:[#allocation3 + $0x30] sm:$0xff]
        %v1117 = vld [vmem:[#allocation3 + $0x38] sm:$0xff]
        %v1118 = vld [vmem:[#allocation3 + $0x40] sm:$0xff]
        %v1119 = vld [vmem:[#allocation3 + $0x48] sm:$0xff]
        %v1120 = vld [vmem:[#allocation3 + $0x50] sm:$0xff]
        %v1121 = vld [vmem:[#allocation3 + $0x58] sm:$0xff]
        %v1122 = vld [vmem:[#allocation3 + $0x60] sm:$0xff]
        %v1123 = vld [vmem:[#allocation3 + $0x68] sm:$0xff]
        %v1124 = vld [vmem:[#allocation3 + $0x70] sm:$0xff]
        %v1125 = vld [vmem:[#allocation3 + $0x78] sm:$0xff]
        %v1126 = vld [vmem:[#allocation3 + $0x80] sm:$0xff]
        %v1127 = vld [vmem:[#allocation3 + $0x88] sm:$0xff]
        %v1128 = vld [vmem:[#allocation3 + $0x90] sm:$0xff]
        %v1129 = vld [vmem:[#allocation3 + $0x98] sm:$0xff]
        %v1130 = vld [vmem:[#allocation3 + $0xa0] sm:$0xff]
        %v1131 = vld [vmem:[#allocation3 + $0xa8] sm:$0xff]
        %v1132 = vld [vmem:[#allocation3 + $0xb0] sm:$0xff]
        %v1133 = vld [vmem:[#allocation3 + $0xb8] sm:$0xff]
        %v1134 = vld [vmem:[#allocation3 + $0xc0] sm:$0xff]
        %v1135 = vld [vmem:[#allocation3 + $0xc8] sm:$0xff]
        %v1136 = vld [vmem:[#allocation3 + $0xd0] sm:$0xff]
        %v1137 = vld [vmem:[#allocation3 + $0xd8] sm:$0xff]
        %v1138 = vld [vmem:[#allocation3 + $0xe0] sm:$0xff]
        %v1139 = vld [vmem:[#allocation3 + $0xe8] sm:$0xff]
        %v1140 = vld [vmem:[#allocation3 + $0xf0] sm:$0xff]
        %v1141 = vld [vmem:[#allocation3 + $0xf8] sm:$0xff]
        %v1142 = vmax.f32 %v952, %v954
        %1143 = vmax.xlane.f32.xlu0 %v1142
        %v1144 = vpop.xlane.xlu0 %1143
        %v1145 = vmax.f32 %v956, %v958
        %1146 = vmax.xlane.f32.xlu0 %v1145
        %v1147 = vpop.xlane.xlu0 %1146
        %v1148 = vmax.f32 %v962, %v964
        %1149 = vmax.xlane.f32.xlu0 %v1148
        %v1150 = vpop.xlane.xlu0 %1149
        %v1151 = vmax.f32 %v966, %v968
        %1152 = vmax.xlane.f32.xlu0 %v1151
        %v1153 = vpop.xlane.xlu0 %1152
        %v1154 = vmax.f32 %v972, %v974
        %1155 = vmax.xlane.f32.xlu0 %v1154
        %v1156 = vpop.xlane.xlu0 %1155
        %v1157 = vmax.f32 %v976, %v978
        %1158 = vmax.xlane.f32.xlu0 %v1157
        %v1159 = vpop.xlane.xlu0 %1158
        %v1160 = vmax.f32 %v982, %v984
        %1161 = vmax.xlane.f32.xlu0 %v1160
        %v1162 = vpop.xlane.xlu0 %1161
        %v1163 = vmax.f32 %v986, %v988
        %1164 = vmax.xlane.f32.xlu0 %v1163
        %v1165 = vpop.xlane.xlu0 %1164
        %v1166 = vmax.f32 %v992, %v994
        %1167 = vmax.xlane.f32.xlu0 %v1166
        %v1168 = vpop.xlane.xlu0 %1167
        %v1169 = vmax.f32 %v996, %v998
        %1170 = vmax.xlane.f32.xlu0 %v1169
        %v1171 = vpop.xlane.xlu0 %1170
        %v1172 = vmax.f32 %v1002, %v1004
        %1173 = vmax.xlane.f32.xlu0 %v1172
        %v1174 = vpop.xlane.xlu0 %1173
        %v1175 = vmax.f32 %v1006, %v1008
        %1176 = vmax.xlane.f32.xlu0 %v1175
        %v1177 = vpop.xlane.xlu0 %1176
        %v1178 = vmax.f32 %v1012, %v1014
        %1179 = vmax.xlane.f32.xlu0 %v1178
        %v1180 = vpop.xlane.xlu0 %1179
        %v1181 = vmax.f32 %v1016, %v1018
        %1182 = vmax.xlane.f32.xlu0 %v1181
        %v1183 = vpop.xlane.xlu0 %1182
        %v1184 = vmax.f32 %v1022, %v1024
        %1185 = vmax.xlane.f32.xlu0 %v1184
        %v1186 = vpop.xlane.xlu0 %1185
        %v1187 = vmax.f32 %v1026, %v1028
        %1188 = vmax.xlane.f32.xlu0 %v1187
        %v1189 = vpop.xlane.xlu0 %1188
        %v1190 = vmax.f32 %v1032, %v1034
        %1191 = vmax.xlane.f32.xlu0 %v1190
        %v1192 = vpop.xlane.xlu0 %1191
        %v1193 = vmax.f32 %v1036, %v1038
        %1194 = vmax.xlane.f32.xlu0 %v1193
        %v1195 = vpop.xlane.xlu0 %1194
        %v1196 = vmax.f32 %v1042, %v1044
        %1197 = vmax.xlane.f32.xlu0 %v1196
        %v1198 = vpop.xlane.xlu0 %1197
        %v1199 = vmax.f32 %v1046, %v1048
        %1200 = vmax.xlane.f32.xlu0 %v1199
        %v1201 = vpop.xlane.xlu0 %1200
        %v1202 = vmax.f32 %v1052, %v1054
        %1203 = vmax.xlane.f32.xlu0 %v1202
        %v1204 = vpop.xlane.xlu0 %1203
        %v1205 = vmax.f32 %v1056, %v1058
        %1206 = vmax.xlane.f32.xlu0 %v1205
        %v1207 = vpop.xlane.xlu0 %1206
        %v1208 = vmax.f32 %v1062, %v1064
        %1209 = vmax.xlane.f32.xlu0 %v1208
        %v1210 = vpop.xlane.xlu0 %1209
        %v1211 = vmax.f32 %v1066, %v1068
        %1212 = vmax.xlane.f32.xlu0 %v1211
        %v1213 = vpop.xlane.xlu0 %1212
        %v1214 = vmax.f32 %v1072, %v1074
        %1215 = vmax.xlane.f32.xlu0 %v1214
        %v1216 = vpop.xlane.xlu0 %1215
        %v1217 = vmax.f32 %v1076, %v1078
        %1218 = vmax.xlane.f32.xlu0 %v1217
        %v1219 = vpop.xlane.xlu0 %1218
        %v1220 = vmax.f32 %v1082, %v1084
        %1221 = vmax.xlane.f32.xlu0 %v1220
        %v1222 = vpop.xlane.xlu0 %1221
        %v1223 = vmax.f32 %v1086, %v1088
        %1224 = vmax.xlane.f32.xlu0 %v1223
        %v1225 = vpop.xlane.xlu0 %1224
        %v1226 = vmax.f32 %v1092, %v1094
        %1227 = vmax.xlane.f32.xlu0 %v1226
        %v1228 = vpop.xlane.xlu0 %1227
        %v1229 = vmax.f32 %v1096, %v1098
        %1230 = vmax.xlane.f32.xlu0 %v1229
        %v1231 = vpop.xlane.xlu0 %1230
        %v1232 = vmax.f32 %v1102, %v1104
        %1233 = vmax.xlane.f32.xlu0 %v1232
        %v1234 = vpop.xlane.xlu0 %1233
        %v1235 = vmax.f32 %v1106, %v1108
        %1236 = vmax.xlane.f32.xlu0 %v1235
        %v1237 = vpop.xlane.xlu0 %1236
        %v1238 = vmax.f32 %v1110, %v1144
        %v1239 = vmax.f32 %v1111, %v1147
        %v1240 = vmax.f32 %v1112, %v1150
        %v1241 = vmax.f32 %v1113, %v1153
        %v1242 = vmax.f32 %v1114, %v1156
        %v1243 = vmax.f32 %v1115, %v1159
        %v1244 = vmax.f32 %v1116, %v1162
        %v1245 = vmax.f32 %v1117, %v1165
        %v1246 = vmax.f32 %v1118, %v1168
        %v1247 = vmax.f32 %v1119, %v1171
        %v1248 = vmax.f32 %v1120, %v1174
        %v1249 = vmax.f32 %v1121, %v1177
        %v1250 = vmax.f32 %v1122, %v1180
        %v1251 = vmax.f32 %v1123, %v1183
        %v1252 = vmax.f32 %v1124, %v1186
        %v1253 = vmax.f32 %v1125, %v1189
        %v1254 = vmax.f32 %v1126, %v1192
        %v1255 = vmax.f32 %v1127, %v1195
        %v1256 = vmax.f32 %v1128, %v1198
        %v1257 = vmax.f32 %v1129, %v1201
        %v1258 = vmax.f32 %v1130, %v1204
        %v1259 = vmax.f32 %v1131, %v1207
        %v1260 = vmax.f32 %v1132, %v1210
        %v1261 = vmax.f32 %v1133, %v1213
        %v1262 = vmax.f32 %v1134, %v1216
        %v1263 = vmax.f32 %v1135, %v1219
        %v1264 = vmax.f32 %v1136, %v1222
        %v1265 = vmax.f32 %v1137, %v1225
        %v1266 = vmax.f32 %v1138, %v1228
        %v1267 = vmax.f32 %v1139, %v1231
        %v1268 = vmax.f32 %v1140, %v1234
        %v1269 = vmax.f32 %v1141, %v1237
        %v1270 = vsub.f32 %v1110, %v1238
        %v1271 = vsub.f32 %v1111, %v1239
        %v1272 = vsub.f32 %v1112, %v1240
        %v1273 = vsub.f32 %v1113, %v1241
        %v1274 = vsub.f32 %v1114, %v1242
        %v1275 = vsub.f32 %v1115, %v1243
        %v1276 = vsub.f32 %v1116, %v1244
        %v1277 = vsub.f32 %v1117, %v1245
        %v1278 = vsub.f32 %v1118, %v1246
        %v1279 = vsub.f32 %v1119, %v1247
        %v1280 = vsub.f32 %v1120, %v1248
        %v1281 = vsub.f32 %v1121, %v1249
        %v1282 = vsub.f32 %v1122, %v1250
        %v1283 = vsub.f32 %v1123, %v1251
        %v1284 = vsub.f32 %v1124, %v1252
        %v1285 = vsub.f32 %v1125, %v1253
        %v1286 = vsub.f32 %v1126, %v1254
        %v1287 = vsub.f32 %v1127, %v1255
        %v1288 = vsub.f32 %v1128, %v1256
        %v1289 = vsub.f32 %v1129, %v1257
        %v1290 = vsub.f32 %v1130, %v1258
        %v1291 = vsub.f32 %v1131, %v1259
        %v1292 = vsub.f32 %v1132, %v1260
        %v1293 = vsub.f32 %v1133, %v1261
        %v1294 = vsub.f32 %v1134, %v1262
        %v1295 = vsub.f32 %v1135, %v1263
        %v1296 = vsub.f32 %v1136, %v1264
        %v1297 = vsub.f32 %v1137, %v1265
        %v1298 = vsub.f32 %v1138, %v1266
        %v1299 = vsub.f32 %v1139, %v1267
        %v1300 = vsub.f32 %v1140, %v1268
        %v1301 = vsub.f32 %v1141, %v1269
        %v1302 = vmul.f32 %v1270, 1.442695
        %v1303 = vpow.pop %v1302
        %v1304 = vmul.f32 %v1271, 1.442695
        %v1305 = vpow.pop %v1304
        %v1306 = vmul.f32 %v1272, 1.442695
        %v1307 = vpow.pop %v1306
        %v1308 = vmul.f32 %v1273, 1.442695
        %v1309 = vpow.pop %v1308
        %v1310 = vmul.f32 %v1274, 1.442695
        %v1311 = vpow.pop %v1310
        %v1312 = vmul.f32 %v1275, 1.442695
        %v1313 = vpow.pop %v1312
        %v1314 = vmul.f32 %v1276, 1.442695
        %v1315 = vpow.pop %v1314
        %v1316 = vmul.f32 %v1277, 1.442695
        %v1317 = vpow.pop %v1316
        %v1318 = vmul.f32 %v1278, 1.442695
        %v1319 = vpow.pop %v1318
        %v1320 = vmul.f32 %v1279, 1.442695
        %v1321 = vpow.pop %v1320
        %v1322 = vmul.f32 %v1280, 1.442695
        %v1323 = vpow.pop %v1322
        %v1324 = vmul.f32 %v1281, 1.442695
        %v1325 = vpow.pop %v1324
        %v1326 = vmul.f32 %v1282, 1.442695
        %v1327 = vpow.pop %v1326
        %v1328 = vmul.f32 %v1283, 1.442695
        %v1329 = vpow.pop %v1328
        %v1330 = vmul.f32 %v1284, 1.442695
        %v1331 = vpow.pop %v1330
        %v1332 = vmul.f32 %v1285, 1.442695
        %v1333 = vpow.pop %v1332
        %v1334 = vmul.f32 %v1286, 1.442695
        %v1335 = vpow.pop %v1334
        %v1336 = vmul.f32 %v1287, 1.442695
        %v1337 = vpow.pop %v1336
        %v1338 = vmul.f32 %v1288, 1.442695
        %v1339 = vpow.pop %v1338
        %v1340 = vmul.f32 %v1289, 1.442695
        %v1341 = vpow.pop %v1340
        %v1342 = vmul.f32 %v1290, 1.442695
        %v1343 = vpow.pop %v1342
        %v1344 = vmul.f32 %v1291, 1.442695
        %v1345 = vpow.pop %v1344
        %v1346 = vmul.f32 %v1292, 1.442695
        %v1347 = vpow.pop %v1346
        %v1348 = vmul.f32 %v1293, 1.442695
        %v1349 = vpow.pop %v1348
        %v1350 = vmul.f32 %v1294, 1.442695
        %v1351 = vpow.pop %v1350
        %v1352 = vmul.f32 %v1295, 1.442695
        %v1353 = vpow.pop %v1352
        %v1354 = vmul.f32 %v1296, 1.442695
        %v1355 = vpow.pop %v1354
        %v1356 = vmul.f32 %v1297, 1.442695
        %v1357 = vpow.pop %v1356
        %v1358 = vmul.f32 %v1298, 1.442695
        %v1359 = vpow.pop %v1358
        %v1360 = vmul.f32 %v1299, 1.442695
        %v1361 = vpow.pop %v1360
        %v1362 = vmul.f32 %v1300, 1.442695
        %v1363 = vpow.pop %v1362
        %v1364 = vmul.f32 %v1301, 1.442695
        %v1365 = vpow.pop %v1364
        %1367 = vset.pattern.permute.xlu0 0
        %1368 = vperm.xlu0 %1367, %v1238
        %v1369 = vpop.permute.xlu0 %1368
        %1372 = vset.pattern.permute.xlu0 0
        %1373 = vperm.xlu0 %1372, %v1239
        %v1374 = vpop.permute.xlu0 %1373
        %1377 = vset.pattern.permute.xlu0 0
        %1378 = vperm.xlu0 %1377, %v1240
        %v1379 = vpop.permute.xlu0 %1378
        %1382 = vset.pattern.permute.xlu0 0
        %1383 = vperm.xlu0 %1382, %v1241
        %v1384 = vpop.permute.xlu0 %1383
        %1387 = vset.pattern.permute.xlu0 0
        %1388 = vperm.xlu0 %1387, %v1242
        %v1389 = vpop.permute.xlu0 %1388
        %1392 = vset.pattern.permute.xlu0 0
        %1393 = vperm.xlu0 %1392, %v1243
        %v1394 = vpop.permute.xlu0 %1393
        %1397 = vset.pattern.permute.xlu0 0
        %1398 = vperm.xlu0 %1397, %v1244
        %v1399 = vpop.permute.xlu0 %1398
        %1402 = vset.pattern.permute.xlu0 0
        %1403 = vperm.xlu0 %1402, %v1245
        %v1404 = vpop.permute.xlu0 %1403
        %1407 = vset.pattern.permute.xlu0 0
        %1408 = vperm.xlu0 %1407, %v1246
        %v1409 = vpop.permute.xlu0 %1408
        %1412 = vset.pattern.permute.xlu0 0
        %1413 = vperm.xlu0 %1412, %v1247
        %v1414 = vpop.permute.xlu0 %1413
        %1417 = vset.pattern.permute.xlu0 0
        %1418 = vperm.xlu0 %1417, %v1248
        %v1419 = vpop.permute.xlu0 %1418
        %1422 = vset.pattern.permute.xlu0 0
        %1423 = vperm.xlu0 %1422, %v1249
        %v1424 = vpop.permute.xlu0 %1423
        %1427 = vset.pattern.permute.xlu0 0
        %1428 = vperm.xlu0 %1427, %v1250
        %v1429 = vpop.permute.xlu0 %1428
        %1432 = vset.pattern.permute.xlu0 0
        %1433 = vperm.xlu0 %1432, %v1251
        %v1434 = vpop.permute.xlu0 %1433
        %1437 = vset.pattern.permute.xlu0 0
        %1438 = vperm.xlu0 %1437, %v1252
        %v1439 = vpop.permute.xlu0 %1438
        %1442 = vset.pattern.permute.xlu0 0
        %1443 = vperm.xlu0 %1442, %v1253
        %v1444 = vpop.permute.xlu0 %1443
        %1447 = vset.pattern.permute.xlu0 0
        %1448 = vperm.xlu0 %1447, %v1254
        %v1449 = vpop.permute.xlu0 %1448
        %1452 = vset.pattern.permute.xlu0 0
        %1453 = vperm.xlu0 %1452, %v1255
        %v1454 = vpop.permute.xlu0 %1453
        %1457 = vset.pattern.permute.xlu0 0
        %1458 = vperm.xlu0 %1457, %v1256
        %v1459 = vpop.permute.xlu0 %1458
        %1462 = vset.pattern.permute.xlu0 0
        %1463 = vperm.xlu0 %1462, %v1257
        %v1464 = vpop.permute.xlu0 %1463
        %1467 = vset.pattern.permute.xlu0 0
        %1468 = vperm.xlu0 %1467, %v1258
        %v1469 = vpop.permute.xlu0 %1468
        %1472 = vset.pattern.permute.xlu0 0
        %1473 = vperm.xlu0 %1472, %v1259
        %v1474 = vpop.permute.xlu0 %1473
        %1477 = vset.pattern.permute.xlu0 0
        %1478 = vperm.xlu0 %1477, %v1260
        %v1479 = vpop.permute.xlu0 %1478
        %1482 = vset.pattern.permute.xlu0 0
        %1483 = vperm.xlu0 %1482, %v1261
        %v1484 = vpop.permute.xlu0 %1483
        %1487 = vset.pattern.permute.xlu0 0
        %1488 = vperm.xlu0 %1487, %v1262
        %v1489 = vpop.permute.xlu0 %1488
        %1492 = vset.pattern.permute.xlu0 0
        %1493 = vperm.xlu0 %1492, %v1263
        %v1494 = vpop.permute.xlu0 %1493
        %1497 = vset.pattern.permute.xlu0 0
        %1498 = vperm.xlu0 %1497, %v1264
        %v1499 = vpop.permute.xlu0 %1498
        %1502 = vset.pattern.permute.xlu0 0
        %1503 = vperm.xlu0 %1502, %v1265
        %v1504 = vpop.permute.xlu0 %1503
        %1507 = vset.pattern.permute.xlu0 0
        %1508 = vperm.xlu0 %1507, %v1266
        %v1509 = vpop.permute.xlu0 %1508
        %1512 = vset.pattern.permute.xlu0 0
        %1513 = vperm.xlu0 %1512, %v1267
        %v1514 = vpop.permute.xlu0 %1513
        %1517 = vset.pattern.permute.xlu0 0
        %1518 = vperm.xlu0 %1517, %v1268
        %v1519 = vpop.permute.xlu0 %1518
        %1522 = vset.pattern.permute.xlu0 0
        %1523 = vperm.xlu0 %1522, %v1269
        %v1524 = vpop.permute.xlu0 %1523
        %v1526 = vsub.f32 %v952, %v1369
        %v1527 = vsub.f32 %v954, %v1369
        %v1528 = vsub.f32 %v956, %v1374
        %v1529 = vsub.f32 %v958, %v1374
        %v1530 = vsub.f32 %v962, %v1379
        %v1531 = vsub.f32 %v964, %v1379
        %v1532 = vsub.f32 %v966, %v1384
        %v1533 = vsub.f32 %v968, %v1384
        %v1534 = vsub.f32 %v972, %v1389
        %v1535 = vsub.f32 %v974, %v1389
        %v1536 = vsub.f32 %v976, %v1394
        %v1537 = vsub.f32 %v978, %v1394
        %v1538 = vsub.f32 %v982, %v1399
        %v1539 = vsub.f32 %v984, %v1399
        %v1540 = vsub.f32 %v986, %v1404
        %v1541 = vsub.f32 %v988, %v1404
        %v1542 = vsub.f32 %v992, %v1409
        %v1543 = vsub.f32 %v994, %v1409
        %v1544 = vsub.f32 %v996, %v1414
        %v1545 = vsub.f32 %v998, %v1414
        %v1546 = vsub.f32 %v1002, %v1419
        %v1547 = vsub.f32 %v1004, %v1419
        %v1548 = vsub.f32 %v1006, %v1424
        %v1549 = vsub.f32 %v1008, %v1424
        %v1550 = vsub.f32 %v1012, %v1429
        %v1551 = vsub.f32 %v1014, %v1429
        %v1552 = vsub.f32 %v1016, %v1434
        %v1553 = vsub.f32 %v1018, %v1434
        %v1554 = vsub.f32 %v1022, %v1439
        %v1555 = vsub.f32 %v1024, %v1439
        %v1556 = vsub.f32 %v1026, %v1444
        %v1557 = vsub.f32 %v1028, %v1444
        %v1558 = vsub.f32 %v1032, %v1449
        %v1559 = vsub.f32 %v1034, %v1449
        %v1560 = vsub.f32 %v1036, %v1454
        %v1561 = vsub.f32 %v1038, %v1454
        %v1562 = vsub.f32 %v1042, %v1459
        %v1563 = vsub.f32 %v1044, %v1459
        %v1564 = vsub.f32 %v1046, %v1464
        %v1565 = vsub.f32 %v1048, %v1464
        %v1566 = vsub.f32 %v1052, %v1469
        %v1567 = vsub.f32 %v1054, %v1469
        %v1568 = vsub.f32 %v1056, %v1474
        %v1569 = vsub.f32 %v1058, %v1474
        %v1570 = vsub.f32 %v1062, %v1479
        %v1571 = vsub.f32 %v1064, %v1479
        %v1572 = vsub.f32 %v1066, %v1484
        %v1573 = vsub.f32 %v1068, %v1484
        %v1574 = vsub.f32 %v1072, %v1489
        %v1575 = vsub.f32 %v1074, %v1489
        %v1576 = vsub.f32 %v1076, %v1494
        %v1577 = vsub.f32 %v1078, %v1494
        %v1578 = vsub.f32 %v1082, %v1499
        %v1579 = vsub.f32 %v1084, %v1499
        %v1580 = vsub.f32 %v1086, %v1504
        %v1581 = vsub.f32 %v1088, %v1504
        %v1582 = vsub.f32 %v1092, %v1509
        %v1583 = vsub.f32 %v1094, %v1509
        %v1584 = vsub.f32 %v1096, %v1514
        %v1585 = vsub.f32 %v1098, %v1514
        %v1586 = vsub.f32 %v1102, %v1519
        %v1587 = vsub.f32 %v1104, %v1519
        %v1588 = vsub.f32 %v1106, %v1524
        %v1589 = vsub.f32 %v1108, %v1524
        %v1590 = vmul.f32 %v1526, 1.442695
        %v1591 = vpow.pop %v1590
        %v1592 = vmul.f32 %v1527, 1.442695
        %v1593 = vpow.pop %v1592
        %v1594 = vmul.f32 %v1528, 1.442695
        %v1595 = vpow.pop %v1594
        %v1596 = vmul.f32 %v1529, 1.442695
        %v1597 = vpow.pop %v1596
        %v1598 = vmul.f32 %v1530, 1.442695
        %v1599 = vpow.pop %v1598
        %v1600 = vmul.f32 %v1531, 1.442695
        %v1601 = vpow.pop %v1600
        %v1602 = vmul.f32 %v1532, 1.442695
        %v1603 = vpow.pop %v1602
        %v1604 = vmul.f32 %v1533, 1.442695
        %v1605 = vpow.pop %v1604
        %v1606 = vmul.f32 %v1534, 1.442695
        %v1607 = vpow.pop %v1606
        %v1608 = vmul.f32 %v1535, 1.442695
        %v1609 = vpow.pop %v1608
        %v1610 = vmul.f32 %v1536, 1.442695
        %v1611 = vpow.pop %v1610
        %v1612 = vmul.f32 %v1537, 1.442695
        %v1613 = vpow.pop %v1612
        %v1614 = vmul.f32 %v1538, 1.442695
        %v1615 = vpow.pop %v1614
        %v1616 = vmul.f32 %v1539, 1.442695
        %v1617 = vpow.pop %v1616
        %v1618 = vmul.f32 %v1540, 1.442695
        %v1619 = vpow.pop %v1618
        %v1620 = vmul.f32 %v1541, 1.442695
        %v1621 = vpow.pop %v1620
        %v1622 = vmul.f32 %v1542, 1.442695
        %v1623 = vpow.pop %v1622
        %v1624 = vmul.f32 %v1543, 1.442695
        %v1625 = vpow.pop %v1624
        %v1626 = vmul.f32 %v1544, 1.442695
        %v1627 = vpow.pop %v1626
        %v1628 = vmul.f32 %v1545, 1.442695
        %v1629 = vpow.pop %v1628
        %v1630 = vmul.f32 %v1546, 1.442695
        %v1631 = vpow.pop %v1630
        %v1632 = vmul.f32 %v1547, 1.442695
        %v1633 = vpow.pop %v1632
        %v1634 = vmul.f32 %v1548, 1.442695
        %v1635 = vpow.pop %v1634
        %v1636 = vmul.f32 %v1549, 1.442695
        %v1637 = vpow.pop %v1636
        %v1638 = vmul.f32 %v1550, 1.442695
        %v1639 = vpow.pop %v1638
        %v1640 = vmul.f32 %v1551, 1.442695
        %v1641 = vpow.pop %v1640
        %v1642 = vmul.f32 %v1552, 1.442695
        %v1643 = vpow.pop %v1642
        %v1644 = vmul.f32 %v1553, 1.442695
        %v1645 = vpow.pop %v1644
        %v1646 = vmul.f32 %v1554, 1.442695
        %v1647 = vpow.pop %v1646
        %v1648 = vmul.f32 %v1555, 1.442695
        %v1649 = vpow.pop %v1648
        %v1650 = vmul.f32 %v1556, 1.442695
        %v1651 = vpow.pop %v1650
        %v1652 = vmul.f32 %v1557, 1.442695
        %v1653 = vpow.pop %v1652
        %v1654 = vmul.f32 %v1558, 1.442695
        %v1655 = vpow.pop %v1654
        %v1656 = vmul.f32 %v1559, 1.442695
        %v1657 = vpow.pop %v1656
        %v1658 = vmul.f32 %v1560, 1.442695
        %v1659 = vpow.pop %v1658
        %v1660 = vmul.f32 %v1561, 1.442695
        %v1661 = vpow.pop %v1660
        %v1662 = vmul.f32 %v1562, 1.442695
        %v1663 = vpow.pop %v1662
        %v1664 = vmul.f32 %v1563, 1.442695
        %v1665 = vpow.pop %v1664
        %v1666 = vmul.f32 %v1564, 1.442695
        %v1667 = vpow.pop %v1666
        %v1668 = vmul.f32 %v1565, 1.442695
        %v1669 = vpow.pop %v1668
        %v1670 = vmul.f32 %v1566, 1.442695
        %v1671 = vpow.pop %v1670
        %v1672 = vmul.f32 %v1567, 1.442695
        %v1673 = vpow.pop %v1672
        %v1674 = vmul.f32 %v1568, 1.442695
        %v1675 = vpow.pop %v1674
        %v1676 = vmul.f32 %v1569, 1.442695
        %v1677 = vpow.pop %v1676
        %v1678 = vmul.f32 %v1570, 1.442695
        %v1679 = vpow.pop %v1678
        %v1680 = vmul.f32 %v1571, 1.442695
        %v1681 = vpow.pop %v1680
        %v1682 = vmul.f32 %v1572, 1.442695
        %v1683 = vpow.pop %v1682
        %v1684 = vmul.f32 %v1573, 1.442695
        %v1685 = vpow.pop %v1684
        %v1686 = vmul.f32 %v1574, 1.442695
        %v1687 = vpow.pop %v1686
        %v1688 = vmul.f32 %v1575, 1.442695
        %v1689 = vpow.pop %v1688
        %v1690 = vmul.f32 %v1576, 1.442695
        %v1691 = vpow.pop %v1690
        %v1692 = vmul.f32 %v1577, 1.442695
        %v1693 = vpow.pop %v1692
        %v1694 = vmul.f32 %v1578, 1.442695
        %v1695 = vpow.pop %v1694
        %v1696 = vmul.f32 %v1579, 1.442695
        %v1697 = vpow.pop %v1696
        %v1698 = vmul.f32 %v1580, 1.442695
        %v1699 = vpow.pop %v1698
        %v1700 = vmul.f32 %v1581, 1.442695
        %v1701 = vpow.pop %v1700
        %v1702 = vmul.f32 %v1582, 1.442695
        %v1703 = vpow.pop %v1702
        %v1704 = vmul.f32 %v1583, 1.442695
        %v1705 = vpow.pop %v1704
        %v1706 = vmul.f32 %v1584, 1.442695
        %v1707 = vpow.pop %v1706
        %v1708 = vmul.f32 %v1585, 1.442695
        %v1709 = vpow.pop %v1708
        %v1710 = vmul.f32 %v1586, 1.442695
        %v1711 = vpow.pop %v1710
        %v1712 = vmul.f32 %v1587, 1.442695
        %v1713 = vpow.pop %v1712
        %v1714 = vmul.f32 %v1588, 1.442695
        %v1715 = vpow.pop %v1714
        %v1716 = vmul.f32 %v1589, 1.442695
        %v1717 = vpow.pop %v1716
        %v1718 = vld [vmem:[#allocation4] sm:$0xff]
        %v1719 = vld [vmem:[#allocation4 + $0x8] sm:$0xff]
        %v1720 = vld [vmem:[#allocation4 + $0x10] sm:$0xff]
        %v1721 = vld [vmem:[#allocation4 + $0x18] sm:$0xff]
        %v1722 = vld [vmem:[#allocation4 + $0x20] sm:$0xff]
        %v1723 = vld [vmem:[#allocation4 + $0x28] sm:$0xff]
        %v1724 = vld [vmem:[#allocation4 + $0x30] sm:$0xff]
        %v1725 = vld [vmem:[#allocation4 + $0x38] sm:$0xff]
        %v1726 = vld [vmem:[#allocation4 + $0x40] sm:$0xff]
        %v1727 = vld [vmem:[#allocation4 + $0x48] sm:$0xff]
        %v1728 = vld [vmem:[#allocation4 + $0x50] sm:$0xff]
        %v1729 = vld [vmem:[#allocation4 + $0x58] sm:$0xff]
        %v1730 = vld [vmem:[#allocation4 + $0x60] sm:$0xff]
        %v1731 = vld [vmem:[#allocation4 + $0x68] sm:$0xff]
        %v1732 = vld [vmem:[#allocation4 + $0x70] sm:$0xff]
        %v1733 = vld [vmem:[#allocation4 + $0x78] sm:$0xff]
        %v1734 = vld [vmem:[#allocation4 + $0x80] sm:$0xff]
        %v1735 = vld [vmem:[#allocation4 + $0x88] sm:$0xff]
        %v1736 = vld [vmem:[#allocation4 + $0x90] sm:$0xff]
        %v1737 = vld [vmem:[#allocation4 + $0x98] sm:$0xff]
        %v1738 = vld [vmem:[#allocation4 + $0xa0] sm:$0xff]
        %v1739 = vld [vmem:[#allocation4 + $0xa8] sm:$0xff]
        %v1740 = vld [vmem:[#allocation4 + $0xb0] sm:$0xff]
        %v1741 = vld [vmem:[#allocation4 + $0xb8] sm:$0xff]
        %v1742 = vld [vmem:[#allocation4 + $0xc0] sm:$0xff]
        %v1743 = vld [vmem:[#allocation4 + $0xc8] sm:$0xff]
        %v1744 = vld [vmem:[#allocation4 + $0xd0] sm:$0xff]
        %v1745 = vld [vmem:[#allocation4 + $0xd8] sm:$0xff]
        %v1746 = vld [vmem:[#allocation4 + $0xe0] sm:$0xff]
        %v1747 = vld [vmem:[#allocation4 + $0xe8] sm:$0xff]
        %v1748 = vld [vmem:[#allocation4 + $0xf0] sm:$0xff]
        %v1749 = vld [vmem:[#allocation4 + $0xf8] sm:$0xff]
        %v1750 = vmul.f32 %v1303, %v1718
        %v1751 = vmul.f32 %v1305, %v1719
        %v1752 = vmul.f32 %v1307, %v1720
        %v1753 = vmul.f32 %v1309, %v1721
        %v1754 = vmul.f32 %v1311, %v1722
        %v1755 = vmul.f32 %v1313, %v1723
        %v1756 = vmul.f32 %v1315, %v1724
        %v1757 = vmul.f32 %v1317, %v1725
        %v1758 = vmul.f32 %v1319, %v1726
        %v1759 = vmul.f32 %v1321, %v1727
        %v1760 = vmul.f32 %v1323, %v1728
        %v1761 = vmul.f32 %v1325, %v1729
        %v1762 = vmul.f32 %v1327, %v1730
        %v1763 = vmul.f32 %v1329, %v1731
        %v1764 = vmul.f32 %v1331, %v1732
        %v1765 = vmul.f32 %v1333, %v1733
        %v1766 = vmul.f32 %v1335, %v1734
        %v1767 = vmul.f32 %v1337, %v1735
        %v1768 = vmul.f32 %v1339, %v1736
        %v1769 = vmul.f32 %v1341, %v1737
        %v1770 = vmul.f32 %v1343, %v1738
        %v1771 = vmul.f32 %v1345, %v1739
        %v1772 = vmul.f32 %v1347, %v1740
        %v1773 = vmul.f32 %v1349, %v1741
        %v1774 = vmul.f32 %v1351, %v1742
        %v1775 = vmul.f32 %v1353, %v1743
        %v1776 = vmul.f32 %v1355, %v1744
        %v1777 = vmul.f32 %v1357, %v1745
        %v1778 = vmul.f32 %v1359, %v1746
        %v1779 = vmul.f32 %v1361, %v1747
        %v1780 = vmul.f32 %v1363, %v1748
        %v1781 = vmul.f32 %v1365, %v1749
        %v1782 = vadd.f32 %v1591, %v1593
        %1783 = vadd.xlane.f32.xlu0 %v1782
        %v1784 = vpop.xlane.xlu0 %1783
        %v1785 = vadd.f32 %v1595, %v1597
        %1786 = vadd.xlane.f32.xlu0 %v1785
        %v1787 = vpop.xlane.xlu0 %1786
        %v1788 = vadd.f32 %v1599, %v1601
        %1789 = vadd.xlane.f32.xlu0 %v1788
        %v1790 = vpop.xlane.xlu0 %1789
        %v1791 = vadd.f32 %v1603, %v1605
        %1792 = vadd.xlane.f32.xlu0 %v1791
        %v1793 = vpop.xlane.xlu0 %1792
        %v1794 = vadd.f32 %v1607, %v1609
        %1795 = vadd.xlane.f32.xlu0 %v1794
        %v1796 = vpop.xlane.xlu0 %1795
        %v1797 = vadd.f32 %v1611, %v1613
        %1798 = vadd.xlane.f32.xlu0 %v1797
        %v1799 = vpop.xlane.xlu0 %1798
        %v1800 = vadd.f32 %v1615, %v1617
        %1801 = vadd.xlane.f32.xlu0 %v1800
        %v1802 = vpop.xlane.xlu0 %1801
        %v1803 = vadd.f32 %v1619, %v1621
        %1804 = vadd.xlane.f32.xlu0 %v1803
        %v1805 = vpop.xlane.xlu0 %1804
        %v1806 = vadd.f32 %v1623, %v1625
        %1807 = vadd.xlane.f32.xlu0 %v1806
        %v1808 = vpop.xlane.xlu0 %1807
        %v1809 = vadd.f32 %v1627, %v1629
        %1810 = vadd.xlane.f32.xlu0 %v1809
        %v1811 = vpop.xlane.xlu0 %1810
        %v1812 = vadd.f32 %v1631, %v1633
        %1813 = vadd.xlane.f32.xlu0 %v1812
        %v1814 = vpop.xlane.xlu0 %1813
        %v1815 = vadd.f32 %v1635, %v1637
        %1816 = vadd.xlane.f32.xlu0 %v1815
        %v1817 = vpop.xlane.xlu0 %1816
        %v1818 = vadd.f32 %v1639, %v1641
        %1819 = vadd.xlane.f32.xlu0 %v1818
        %v1820 = vpop.xlane.xlu0 %1819
        %v1821 = vadd.f32 %v1643, %v1645
        %1822 = vadd.xlane.f32.xlu0 %v1821
        %v1823 = vpop.xlane.xlu0 %1822
        %v1824 = vadd.f32 %v1647, %v1649
        %1825 = vadd.xlane.f32.xlu0 %v1824
        %v1826 = vpop.xlane.xlu0 %1825
        %v1827 = vadd.f32 %v1651, %v1653
        %1828 = vadd.xlane.f32.xlu0 %v1827
        %v1829 = vpop.xlane.xlu0 %1828
        %v1830 = vadd.f32 %v1655, %v1657
        %1831 = vadd.xlane.f32.xlu0 %v1830
        %v1832 = vpop.xlane.xlu0 %1831
        %v1833 = vadd.f32 %v1659, %v1661
        %1834 = vadd.xlane.f32.xlu0 %v1833
        %v1835 = vpop.xlane.xlu0 %1834
        %v1836 = vadd.f32 %v1663, %v1665
        %1837 = vadd.xlane.f32.xlu0 %v1836
        %v1838 = vpop.xlane.xlu0 %1837
        %v1839 = vadd.f32 %v1667, %v1669
        %1840 = vadd.xlane.f32.xlu0 %v1839
        %v1841 = vpop.xlane.xlu0 %1840
        %v1842 = vadd.f32 %v1671, %v1673
        %1843 = vadd.xlane.f32.xlu0 %v1842
        %v1844 = vpop.xlane.xlu0 %1843
        %v1845 = vadd.f32 %v1675, %v1677
        %1846 = vadd.xlane.f32.xlu0 %v1845
        %v1847 = vpop.xlane.xlu0 %1846
        %v1848 = vadd.f32 %v1679, %v1681
        %1849 = vadd.xlane.f32.xlu0 %v1848
        %v1850 = vpop.xlane.xlu0 %1849
        %v1851 = vadd.f32 %v1683, %v1685
        %1852 = vadd.xlane.f32.xlu0 %v1851
        %v1853 = vpop.xlane.xlu0 %1852
        %v1854 = vadd.f32 %v1687, %v1689
        %1855 = vadd.xlane.f32.xlu0 %v1854
        %v1856 = vpop.xlane.xlu0 %1855
        %v1857 = vadd.f32 %v1691, %v1693
        %1858 = vadd.xlane.f32.xlu0 %v1857
        %v1859 = vpop.xlane.xlu0 %1858
        %v1860 = vadd.f32 %v1695, %v1697
        %1861 = vadd.xlane.f32.xlu0 %v1860
        %v1862 = vpop.xlane.xlu0 %1861
        %v1863 = vadd.f32 %v1699, %v1701
        %1864 = vadd.xlane.f32.xlu0 %v1863
        %v1865 = vpop.xlane.xlu0 %1864
        %v1866 = vadd.f32 %v1703, %v1705
        %1867 = vadd.xlane.f32.xlu0 %v1866
        %v1868 = vpop.xlane.xlu0 %1867
        %v1869 = vadd.f32 %v1707, %v1709
        %1870 = vadd.xlane.f32.xlu0 %v1869
        %v1871 = vpop.xlane.xlu0 %1870
        %v1872 = vadd.f32 %v1711, %v1713
        %1873 = vadd.xlane.f32.xlu0 %v1872
        %v1874 = vpop.xlane.xlu0 %1873
        %v1875 = vadd.f32 %v1715, %v1717
        %1876 = vadd.xlane.f32.xlu0 %v1875
        %v1877 = vpop.xlane.xlu0 %1876
        %v1878 = vadd.f32 %v1750, %v1784
        %v1879 = vadd.f32 %v1751, %v1787
        %v1880 = vadd.f32 %v1752, %v1790
        %v1881 = vadd.f32 %v1753, %v1793
        %v1882 = vadd.f32 %v1754, %v1796
        %v1883 = vadd.f32 %v1755, %v1799
        %v1884 = vadd.f32 %v1756, %v1802
        %v1885 = vadd.f32 %v1757, %v1805
        %v1886 = vadd.f32 %v1758, %v1808
        %v1887 = vadd.f32 %v1759, %v1811
        %v1888 = vadd.f32 %v1760, %v1814
        %v1889 = vadd.f32 %v1761, %v1817
        %v1890 = vadd.f32 %v1762, %v1820
        %v1891 = vadd.f32 %v1763, %v1823
        %v1892 = vadd.f32 %v1764, %v1826
        %v1893 = vadd.f32 %v1765, %v1829
        %v1894 = vadd.f32 %v1766, %v1832
        %v1895 = vadd.f32 %v1767, %v1835
        %v1896 = vadd.f32 %v1768, %v1838
        %v1897 = vadd.f32 %v1769, %v1841
        %v1898 = vadd.f32 %v1770, %v1844
        %v1899 = vadd.f32 %v1771, %v1847
        %v1900 = vadd.f32 %v1772, %v1850
        %v1901 = vadd.f32 %v1773, %v1853
        %v1902 = vadd.f32 %v1774, %v1856
        %v1903 = vadd.f32 %v1775, %v1859
        %v1904 = vadd.f32 %v1776, %v1862
        %v1905 = vadd.f32 %v1777, %v1865
        %v1906 = vadd.f32 %v1778, %v1868
        %v1907 = vadd.f32 %v1779, %v1871
        %v1908 = vadd.f32 %v1780, %v1874
        %v1909 = vadd.f32 %v1781, %v1877
        %vm1910 = vcmask 7168
        %1911 = vst.msk [vmem:[#allocation4] sm:$0xff] %vm1910, %v1878
        %1912 = vst.msk [vmem:[#allocation4 + $0x8] sm:$0xff] %vm1910, %v1879
        %1913 = vst.msk [vmem:[#allocation4 + $0x10] sm:$0xff] %vm1910, %v1880
        %1914 = vst.msk [vmem:[#allocation4 + $0x18] sm:$0xff] %vm1910, %v1881
        %1915 = vst.msk [vmem:[#allocation4 + $0x20] sm:$0xff] %vm1910, %v1882
        %1916 = vst.msk [vmem:[#allocation4 + $0x28] sm:$0xff] %vm1910, %v1883
        %1917 = vst.msk [vmem:[#allocation4 + $0x30] sm:$0xff] %vm1910, %v1884
        %1918 = vst.msk [vmem:[#allocation4 + $0x38] sm:$0xff] %vm1910, %v1885
        %1919 = vst.msk [vmem:[#allocation4 + $0x40] sm:$0xff] %vm1910, %v1886
        %1920 = vst.msk [vmem:[#allocation4 + $0x48] sm:$0xff] %vm1910, %v1887
        %1921 = vst.msk [vmem:[#allocation4 + $0x50] sm:$0xff] %vm1910, %v1888
        %1922 = vst.msk [vmem:[#allocation4 + $0x58] sm:$0xff] %vm1910, %v1889
        %1923 = vst.msk [vmem:[#allocation4 + $0x60] sm:$0xff] %vm1910, %v1890
        %1924 = vst.msk [vmem:[#allocation4 + $0x68] sm:$0xff] %vm1910, %v1891
        %1925 = vst.msk [vmem:[#allocation4 + $0x70] sm:$0xff] %vm1910, %v1892
        %1926 = vst.msk [vmem:[#allocation4 + $0x78] sm:$0xff] %vm1910, %v1893
        %1927 = vst.msk [vmem:[#allocation4 + $0x80] sm:$0xff] %vm1910, %v1894
        %1928 = vst.msk [vmem:[#allocation4 + $0x88] sm:$0xff] %vm1910, %v1895
        %1929 = vst.msk [vmem:[#allocation4 + $0x90] sm:$0xff] %vm1910, %v1896
        %1930 = vst.msk [vmem:[#allocation4 + $0x98] sm:$0xff] %vm1910, %v1897
        %1931 = vst.msk [vmem:[#allocation4 + $0xa0] sm:$0xff] %vm1910, %v1898
        %1932 = vst.msk [vmem:[#allocation4 + $0xa8] sm:$0xff] %vm1910, %v1899
        %1933 = vst.msk [vmem:[#allocation4 + $0xb0] sm:$0xff] %vm1910, %v1900
        %1934 = vst.msk [vmem:[#allocation4 + $0xb8] sm:$0xff] %vm1910, %v1901
        %1935 = vst.msk [vmem:[#allocation4 + $0xc0] sm:$0xff] %vm1910, %v1902
        %1936 = vst.msk [vmem:[#allocation4 + $0xc8] sm:$0xff] %vm1910, %v1903
        %1937 = vst.msk [vmem:[#allocation4 + $0xd0] sm:$0xff] %vm1910, %v1904
        %1938 = vst.msk [vmem:[#allocation4 + $0xd8] sm:$0xff] %vm1910, %v1905
        %1939 = vst.msk [vmem:[#allocation4 + $0xe0] sm:$0xff] %vm1910, %v1906
        %1940 = vst.msk [vmem:[#allocation4 + $0xe8] sm:$0xff] %vm1910, %v1907
        %1941 = vst.msk [vmem:[#allocation4 + $0xf0] sm:$0xff] %vm1910, %v1908
        %1942 = vst.msk [vmem:[#allocation4 + $0xf8] sm:$0xff] %vm1910, %v1909
        %v1943 = vld [vmem:[#allocation5] sm:$0xff]
        %v1944 = vld [vmem:[#allocation5 + $0x8] sm:$0xff]
        %v1945 = vld [vmem:[#allocation5 + $0x10] sm:$0xff]
        %v1946 = vld [vmem:[#allocation5 + $0x18] sm:$0xff]
        %v1947 = vld [vmem:[#allocation5 + $0x20] sm:$0xff]
        %v1948 = vld [vmem:[#allocation5 + $0x28] sm:$0xff]
        %v1949 = vld [vmem:[#allocation5 + $0x30] sm:$0xff]
        %v1950 = vld [vmem:[#allocation5 + $0x38] sm:$0xff]
        %v1951 = vld [vmem:[#allocation5 + $0x40] sm:$0xff]
        %v1952 = vld [vmem:[#allocation5 + $0x48] sm:$0xff]
        %v1953 = vld [vmem:[#allocation5 + $0x50] sm:$0xff]
        %v1954 = vld [vmem:[#allocation5 + $0x58] sm:$0xff]
        %v1955 = vld [vmem:[#allocation5 + $0x60] sm:$0xff]
        %v1956 = vld [vmem:[#allocation5 + $0x68] sm:$0xff]
        %v1957 = vld [vmem:[#allocation5 + $0x70] sm:$0xff]
        %v1958 = vld [vmem:[#allocation5 + $0x78] sm:$0xff]
        %v1959 = vld [vmem:[#allocation5 + $0x80] sm:$0xff]
        %v1960 = vld [vmem:[#allocation5 + $0x88] sm:$0xff]
        %v1961 = vld [vmem:[#allocation5 + $0x90] sm:$0xff]
        %v1962 = vld [vmem:[#allocation5 + $0x98] sm:$0xff]
        %v1963 = vld [vmem:[#allocation5 + $0xa0] sm:$0xff]
        %v1964 = vld [vmem:[#allocation5 + $0xa8] sm:$0xff]
        %v1965 = vld [vmem:[#allocation5 + $0xb0] sm:$0xff]
        %v1966 = vld [vmem:[#allocation5 + $0xb8] sm:$0xff]
        %v1967 = vld [vmem:[#allocation5 + $0xc0] sm:$0xff]
        %v1968 = vld [vmem:[#allocation5 + $0xc8] sm:$0xff]
        %v1969 = vld [vmem:[#allocation5 + $0xd0] sm:$0xff]
        %v1970 = vld [vmem:[#allocation5 + $0xd8] sm:$0xff]
        %v1971 = vld [vmem:[#allocation5 + $0xe0] sm:$0xff]
        %v1972 = vld [vmem:[#allocation5 + $0xe8] sm:$0xff]
        %v1973 = vld [vmem:[#allocation5 + $0xf0] sm:$0xff]
        %v1974 = vld [vmem:[#allocation5 + $0xf8] sm:$0xff]
        %1976 = vset.pattern.permute.xlu0 0
        %1977 = vperm.xlu0 %1976, %v1303
        %v1978 = vpop.permute.xlu0 %1977
        %1981 = vset.pattern.permute.xlu0 0
        %1982 = vperm.xlu0 %1981, %v1305
        %v1983 = vpop.permute.xlu0 %1982
        %1986 = vset.pattern.permute.xlu0 0
        %1987 = vperm.xlu0 %1986, %v1307
        %v1988 = vpop.permute.xlu0 %1987
        %1991 = vset.pattern.permute.xlu0 0
        %1992 = vperm.xlu0 %1991, %v1309
        %v1993 = vpop.permute.xlu0 %1992
        %1996 = vset.pattern.permute.xlu0 0
        %1997 = vperm.xlu0 %1996, %v1311
        %v1998 = vpop.permute.xlu0 %1997
        %2001 = vset.pattern.permute.xlu0 0
        %2002 = vperm.xlu0 %2001, %v1313
        %v2003 = vpop.permute.xlu0 %2002
        %2006 = vset.pattern.permute.xlu0 0
        %2007 = vperm.xlu0 %2006, %v1315
        %v2008 = vpop.permute.xlu0 %2007
        %2011 = vset.pattern.permute.xlu0 0
        %2012 = vperm.xlu0 %2011, %v1317
        %v2013 = vpop.permute.xlu0 %2012
        %2016 = vset.pattern.permute.xlu0 0
        %2017 = vperm.xlu0 %2016, %v1319
        %v2018 = vpop.permute.xlu0 %2017
        %2021 = vset.pattern.permute.xlu0 0
        %2022 = vperm.xlu0 %2021, %v1321
        %v2023 = vpop.permute.xlu0 %2022
        %2026 = vset.pattern.permute.xlu0 0
        %2027 = vperm.xlu0 %2026, %v1323
        %v2028 = vpop.permute.xlu0 %2027
        %2031 = vset.pattern.permute.xlu0 0
        %2032 = vperm.xlu0 %2031, %v1325
        %v2033 = vpop.permute.xlu0 %2032
        %2036 = vset.pattern.permute.xlu0 0
        %2037 = vperm.xlu0 %2036, %v1327
        %v2038 = vpop.permute.xlu0 %2037
        %2041 = vset.pattern.permute.xlu0 0
        %2042 = vperm.xlu0 %2041, %v1329
        %v2043 = vpop.permute.xlu0 %2042
        %2046 = vset.pattern.permute.xlu0 0
        %2047 = vperm.xlu0 %2046, %v1331
        %v2048 = vpop.permute.xlu0 %2047
        %2051 = vset.pattern.permute.xlu0 0
        %2052 = vperm.xlu0 %2051, %v1333
        %v2053 = vpop.permute.xlu0 %2052
        %2056 = vset.pattern.permute.xlu0 0
        %2057 = vperm.xlu0 %2056, %v1335
        %v2058 = vpop.permute.xlu0 %2057
        %2061 = vset.pattern.permute.xlu0 0
        %2062 = vperm.xlu0 %2061, %v1337
        %v2063 = vpop.permute.xlu0 %2062
        %2066 = vset.pattern.permute.xlu0 0
        %2067 = vperm.xlu0 %2066, %v1339
        %v2068 = vpop.permute.xlu0 %2067
        %2071 = vset.pattern.permute.xlu0 0
        %2072 = vperm.xlu0 %2071, %v1341
        %v2073 = vpop.permute.xlu0 %2072
        %2076 = vset.pattern.permute.xlu0 0
        %2077 = vperm.xlu0 %2076, %v1343
        %v2078 = vpop.permute.xlu0 %2077
        %2081 = vset.pattern.permute.xlu0 0
        %2082 = vperm.xlu0 %2081, %v1345
        %v2083 = vpop.permute.xlu0 %2082
        %2086 = vset.pattern.permute.xlu0 0
        %2087 = vperm.xlu0 %2086, %v1347
        %v2088 = vpop.permute.xlu0 %2087
        %2091 = vset.pattern.permute.xlu0 0
        %2092 = vperm.xlu0 %2091, %v1349
        %v2093 = vpop.permute.xlu0 %2092
        %2096 = vset.pattern.permute.xlu0 0
        %2097 = vperm.xlu0 %2096, %v1351
        %v2098 = vpop.permute.xlu0 %2097
        %2101 = vset.pattern.permute.xlu0 0
        %2102 = vperm.xlu0 %2101, %v1353
        %v2103 = vpop.permute.xlu0 %2102
        %2106 = vset.pattern.permute.xlu0 0
        %2107 = vperm.xlu0 %2106, %v1355
        %v2108 = vpop.permute.xlu0 %2107
        %2111 = vset.pattern.permute.xlu0 0
        %2112 = vperm.xlu0 %2111, %v1357
        %v2113 = vpop.permute.xlu0 %2112
        %2116 = vset.pattern.permute.xlu0 0
        %2117 = vperm.xlu0 %2116, %v1359
        %v2118 = vpop.permute.xlu0 %2117
        %2121 = vset.pattern.permute.xlu0 0
        %2122 = vperm.xlu0 %2121, %v1361
        %v2123 = vpop.permute.xlu0 %2122
        %2126 = vset.pattern.permute.xlu0 0
        %2127 = vperm.xlu0 %2126, %v1363
        %v2128 = vpop.permute.xlu0 %2127
        %2131 = vset.pattern.permute.xlu0 0
        %2132 = vperm.xlu0 %2131, %v1365
        %v2133 = vpop.permute.xlu0 %2132
        %v2135 = vmul.f32 %v1978, %v1943
        %v2136 = vmul.f32 %v1983, %v1944
        %v2137 = vmul.f32 %v1988, %v1945
        %v2138 = vmul.f32 %v1993, %v1946
        %v2139 = vmul.f32 %v1998, %v1947
        %v2140 = vmul.f32 %v2003, %v1948
        %v2141 = vmul.f32 %v2008, %v1949
        %v2142 = vmul.f32 %v2013, %v1950
        %v2143 = vmul.f32 %v2018, %v1951
        %v2144 = vmul.f32 %v2023, %v1952
        %v2145 = vmul.f32 %v2028, %v1953
        %v2146 = vmul.f32 %v2033, %v1954
        %v2147 = vmul.f32 %v2038, %v1955
        %v2148 = vmul.f32 %v2043, %v1956
        %v2149 = vmul.f32 %v2048, %v1957
        %v2150 = vmul.f32 %v2053, %v1958
        %v2151 = vmul.f32 %v2058, %v1959
        %v2152 = vmul.f32 %v2063, %v1960
        %v2153 = vmul.f32 %v2068, %v1961
        %v2154 = vmul.f32 %v2073, %v1962
        %v2155 = vmul.f32 %v2078, %v1963
        %v2156 = vmul.f32 %v2083, %v1964
        %v2157 = vmul.f32 %v2088, %v1965
        %v2158 = vmul.f32 %v2093, %v1966
        %v2159 = vmul.f32 %v2098, %v1967
        %v2160 = vmul.f32 %v2103, %v1968
        %v2161 = vmul.f32 %v2108, %v1969
        %v2162 = vmul.f32 %v2113, %v1970
        %v2163 = vmul.f32 %v2118, %v1971
        %v2164 = vmul.f32 %v2123, %v1972
        %v2165 = vmul.f32 %v2128, %v1973
        %v2166 = vmul.f32 %v2133, %v1974
        %v2167 = vpack.c.bf16 %v1595, %v1591
        %v2168 = vpack.c.bf16 %v1597, %v1593
        %v2169 = vpack.c.bf16 %v1603, %v1599
        %v2170 = vpack.c.bf16 %v1605, %v1601
        %v2171 = vpack.c.bf16 %v1611, %v1607
        %v2172 = vpack.c.bf16 %v1613, %v1609
        %v2173 = vpack.c.bf16 %v1619, %v1615
        %v2174 = vpack.c.bf16 %v1621, %v1617
        %v2175 = vpack.c.bf16 %v1627, %v1623
        %v2176 = vpack.c.bf16 %v1629, %v1625
        %v2177 = vpack.c.bf16 %v1635, %v1631
        %v2178 = vpack.c.bf16 %v1637, %v1633
        %v2179 = vpack.c.bf16 %v1643, %v1639
        %v2180 = vpack.c.bf16 %v1645, %v1641
        %v2181 = vpack.c.bf16 %v1651, %v1647
        %v2182 = vpack.c.bf16 %v1653, %v1649
        %v2183 = vpack.c.bf16 %v1659, %v1655
        %v2184 = vpack.c.bf16 %v1661, %v1657
        %v2185 = vpack.c.bf16 %v1667, %v1663
        %v2186 = vpack.c.bf16 %v1669, %v1665
        %v2187 = vpack.c.bf16 %v1675, %v1671
        %v2188 = vpack.c.bf16 %v1677, %v1673
        %v2189 = vpack.c.bf16 %v1683, %v1679
        %v2190 = vpack.c.bf16 %v1685, %v1681
        %v2191 = vpack.c.bf16 %v1691, %v1687
        %v2192 = vpack.c.bf16 %v1693, %v1689
        %v2193 = vpack.c.bf16 %v1699, %v1695
        %v2194 = vpack.c.bf16 %v1701, %v1697
        %v2195 = vpack.c.bf16 %v1707, %v1703
        %v2196 = vpack.c.bf16 %v1709, %v1705
        %v2197 = vpack.c.bf16 %v1715, %v1711
        %v2198 = vpack.c.bf16 %v1717, %v1713
        %v2199 = vld [vmem:[%s266] sm:$0xf]
        %v2200 = vld [vmem:[%s266 + $0x4] sm:$0xf]
        %v2201 = vld [vmem:[%s266 + $0x8] sm:$0xf]
        %v2202 = vld [vmem:[%s266 + $0xc] sm:$0xf]
        %v2203 = vld [vmem:[%s266 + $0x10] sm:$0xf]
        %v2204 = vld [vmem:[%s266 + $0x14] sm:$0xf]
        %v2205 = vld [vmem:[%s266 + $0x18] sm:$0xf]
        %v2206 = vld [vmem:[%s266 + $0x1c] sm:$0xf]
        %v2207 = vld [vmem:[%s266 + $0x20] sm:$0xf]
        %v2208 = vld [vmem:[%s266 + $0x24] sm:$0xf]
        %v2209 = vld [vmem:[%s266 + $0x28] sm:$0xf]
        %v2210 = vld [vmem:[%s266 + $0x2c] sm:$0xf]
        %v2211 = vld [vmem:[%s266 + $0x30] sm:$0xf]
        %v2212 = vld [vmem:[%s266 + $0x34] sm:$0xf]
        %v2213 = vld [vmem:[%s266 + $0x38] sm:$0xf]
        %v2214 = vld [vmem:[%s266 + $0x3c] sm:$0xf]
        %v2215 = vld [vmem:[%s266 + $0x40] sm:$0xf]
        %v2216 = vld [vmem:[%s266 + $0x44] sm:$0xf]
        %v2217 = vld [vmem:[%s266 + $0x48] sm:$0xf]
        %v2218 = vld [vmem:[%s266 + $0x4c] sm:$0xf]
        %v2219 = vld [vmem:[%s266 + $0x50] sm:$0xf]
        %v2220 = vld [vmem:[%s266 + $0x54] sm:$0xf]
        %v2221 = vld [vmem:[%s266 + $0x58] sm:$0xf]
        %v2222 = vld [vmem:[%s266 + $0x5c] sm:$0xf]
        %v2223 = vld [vmem:[%s266 + $0x60] sm:$0xf]
        %v2224 = vld [vmem:[%s266 + $0x64] sm:$0xf]
        %v2225 = vld [vmem:[%s266 + $0x68] sm:$0xf]
        %v2226 = vld [vmem:[%s266 + $0x6c] sm:$0xf]
        %v2227 = vld [vmem:[%s266 + $0x70] sm:$0xf]
        %v2228 = vld [vmem:[%s266 + $0x74] sm:$0xf]
        %v2229 = vld [vmem:[%s266 + $0x78] sm:$0xf]
        %v2230 = vld [vmem:[%s266 + $0x7c] sm:$0xf]
        %v2263 = vunpack.c.l.b16 %v2199
        %v2264 = vunpack.c.l.b16 %v2200
        %v2265 = vunpack.c.l.b16 %v2201
        %v2266 = vunpack.c.l.b16 %v2202
        %v2267 = vunpack.c.l.b16 %v2203
        %v2268 = vunpack.c.l.b16 %v2204
        %v2269 = vunpack.c.l.b16 %v2205
        %v2270 = vunpack.c.l.b16 %v2206
        %v2271 = vunpack.c.l.b16 %v2207
        %v2272 = vunpack.c.l.b16 %v2208
        %v2273 = vunpack.c.l.b16 %v2209
        %v2274 = vunpack.c.l.b16 %v2210
        %v2275 = vunpack.c.l.b16 %v2211
        %v2276 = vunpack.c.l.b16 %v2212
        %v2277 = vunpack.c.l.b16 %v2213
        %v2278 = vunpack.c.l.b16 %v2214
        %v2279 = vunpack.c.l.b16 %v2215
        %v2280 = vunpack.c.l.b16 %v2216
        %v2281 = vunpack.c.l.b16 %v2217
        %v2282 = vunpack.c.l.b16 %v2218
        %v2283 = vunpack.c.l.b16 %v2219
        %v2284 = vunpack.c.l.b16 %v2220
        %v2285 = vunpack.c.l.b16 %v2221
        %v2286 = vunpack.c.l.b16 %v2222
        %v2287 = vunpack.c.l.b16 %v2223
        %v2288 = vunpack.c.l.b16 %v2224
        %v2289 = vunpack.c.l.b16 %v2225
        %v2290 = vunpack.c.l.b16 %v2226
        %v2291 = vunpack.c.l.b16 %v2227
        %v2292 = vunpack.c.l.b16 %v2228
        %v2293 = vunpack.c.l.b16 %v2229
        %v2294 = vunpack.c.l.b16 %v2230
        %v2295 = vpack.c.b16 %v2264, %v2263
        %v2296 = vpack.c.b16 %v2266, %v2265
        %v2297 = vpack.c.b16 %v2268, %v2267
        %v2298 = vpack.c.b16 %v2270, %v2269
        %v2299 = vpack.c.b16 %v2272, %v2271
        %v2300 = vpack.c.b16 %v2274, %v2273
        %v2301 = vpack.c.b16 %v2276, %v2275
        %v2302 = vpack.c.b16 %v2278, %v2277
        %v2303 = vpack.c.b16 %v2280, %v2279
        %v2304 = vpack.c.b16 %v2282, %v2281
        %v2305 = vpack.c.b16 %v2284, %v2283
        %v2306 = vpack.c.b16 %v2286, %v2285
        %v2307 = vpack.c.b16 %v2288, %v2287
        %v2308 = vpack.c.b16 %v2290, %v2289
        %v2309 = vpack.c.b16 %v2292, %v2291
        %v2310 = vpack.c.b16 %v2294, %v2293
        %2327 = vmatprep.subr.bf16.mxu0 0
        %2328 = vmatpush1.bf16.msra.mxu0 %v2302
        %2329 = vmatprep.subr.bf16.mxu0 0
        %2330 = vmatpush1.bf16.msra.mxu0 %v2301
        %2331 = vmatprep.subr.bf16.mxu0 0
        %2332 = vmatpush1.bf16.msra.mxu0 %v2300
        %2333 = vmatprep.subr.bf16.mxu0 0
        %2334 = vmatpush1.bf16.msra.mxu0 %v2299
        %2335 = vmatprep.subr.bf16.mxu0 0
        %2336 = vmatpush1.bf16.msra.mxu0 %v2298
        %2337 = vmatprep.subr.bf16.mxu0 0
        %2338 = vmatpush1.bf16.msra.mxu0 %v2297
        %2339 = vmatprep.subr.bf16.mxu0 0
        %2340 = vmatpush1.bf16.msra.mxu0 %v2296
        %2341 = vmatprep.subr.bf16.mxu0 0
        %2342 = vmatpush1.bf16.msra.mxu0 %v2295
        %2343 = vmatprep.subr.bf16.mxu0 0
        %2344 = vmatpush2.bf16.msra.mxu0 %v2310
        %2345 = vmatprep.subr.bf16.mxu0 0
        %2346 = vmatpush2.bf16.msra.mxu0 %v2309
        %2347 = vmatprep.subr.bf16.mxu0 0
        %2348 = vmatpush2.bf16.msra.mxu0 %v2308
        %2349 = vmatprep.subr.bf16.mxu0 0
        %2350 = vmatpush2.bf16.msra.mxu0 %v2307
        %2351 = vmatprep.subr.bf16.mxu0 0
        %2352 = vmatpush2.bf16.msra.mxu0 %v2306
        %2353 = vmatprep.subr.bf16.mxu0 0
        %2354 = vmatpush2.bf16.msra.mxu0 %v2305
        %2355 = vmatprep.subr.bf16.mxu0 0
        %2356 = vmatpush2.bf16.msra.mxu0 %v2304
        %2357 = vmatprep.subr.bf16.mxu0 0
        %2358 = vmatpush2.bf16.msra.mxu0 %v2303
        %2359 = vmatprep.mubr.bf16.mxu0 %v2168
        %2360 = vmatmul.mubr.bf16.gmra.mxu0 %v2167
        %v2361 = vpop.f32.mrf.mxu0
        %v2362 = vadd.f32 0.0, %v2361
        %v2363 = vpop.f32.mrf.mxu0
        %v2364 = vpop.f32.mrf.mxu0
        %v2365 = vadd.f32 0.0, %v2364
        %v2366 = vpop.f32.mrf.mxu0
        %2367 = vmatprep.mubr.bf16.mxu0 %v2170
        %2368 = vmatmul.mubr.bf16.gmra.mxu0 %v2169
        %v2369 = vpop.f32.mrf.mxu0
        %v2370 = vadd.f32 0.0, %v2369
        %v2371 = vpop.f32.mrf.mxu0
        %v2372 = vpop.f32.mrf.mxu0
        %v2373 = vadd.f32 0.0, %v2372
        %v2374 = vpop.f32.mrf.mxu0
        %2375 = vmatprep.mubr.bf16.mxu0 %v2172
        %2376 = vmatmul.mubr.bf16.gmra.mxu0 %v2171
        %v2377 = vpop.f32.mrf.mxu0
        %v2378 = vadd.f32 0.0, %v2377
        %v2379 = vpop.f32.mrf.mxu0
        %v2380 = vpop.f32.mrf.mxu0
        %v2381 = vadd.f32 0.0, %v2380
        %v2382 = vpop.f32.mrf.mxu0
        %2383 = vmatprep.mubr.bf16.mxu0 %v2174
        %2384 = vmatmul.mubr.bf16.gmra.mxu0 %v2173
        %v2385 = vpop.f32.mrf.mxu0
        %v2386 = vadd.f32 0.0, %v2385
        %v2387 = vpop.f32.mrf.mxu0
        %v2388 = vpop.f32.mrf.mxu0
        %v2389 = vadd.f32 0.0, %v2388
        %v2390 = vpop.f32.mrf.mxu0
        %2391 = vmatprep.mubr.bf16.mxu0 %v2176
        %2392 = vmatmul.mubr.bf16.gmra.mxu0 %v2175
        %v2393 = vpop.f32.mrf.mxu0
        %v2394 = vadd.f32 0.0, %v2393
        %v2395 = vpop.f32.mrf.mxu0
        %v2396 = vpop.f32.mrf.mxu0
        %v2397 = vadd.f32 0.0, %v2396
        %v2398 = vpop.f32.mrf.mxu0
        %2399 = vmatprep.mubr.bf16.mxu0 %v2178
        %2400 = vmatmul.mubr.bf16.gmra.mxu0 %v2177
        %v2401 = vpop.f32.mrf.mxu0
        %v2402 = vadd.f32 0.0, %v2401
        %v2403 = vpop.f32.mrf.mxu0
        %v2404 = vpop.f32.mrf.mxu0
        %v2405 = vadd.f32 0.0, %v2404
        %v2406 = vpop.f32.mrf.mxu0
        %2407 = vmatprep.mubr.bf16.mxu0 %v2180
        %2408 = vmatmul.mubr.bf16.gmra.mxu0 %v2179
        %v2409 = vpop.f32.mrf.mxu0
        %v2410 = vadd.f32 0.0, %v2409
        %v2411 = vpop.f32.mrf.mxu0
        %v2412 = vpop.f32.mrf.mxu0
        %v2413 = vadd.f32 0.0, %v2412
        %v2414 = vpop.f32.mrf.mxu0
        %2415 = vmatprep.mubr.bf16.mxu0 %v2182
        %2416 = vmatmul.mubr.bf16.gmra.mxu0 %v2181
        %v2417 = vpop.f32.mrf.mxu0
        %v2418 = vadd.f32 0.0, %v2417
        %v2419 = vpop.f32.mrf.mxu0
        %v2420 = vpop.f32.mrf.mxu0
        %v2421 = vadd.f32 0.0, %v2420
        %v2422 = vpop.f32.mrf.mxu0
        %2423 = vmatprep.mubr.bf16.mxu0 %v2184
        %2424 = vmatmul.mubr.bf16.gmra.mxu0 %v2183
        %v2425 = vpop.f32.mrf.mxu0
        %v2426 = vadd.f32 0.0, %v2425
        %v2427 = vpop.f32.mrf.mxu0
        %v2428 = vpop.f32.mrf.mxu0
        %v2429 = vadd.f32 0.0, %v2428
        %v2430 = vpop.f32.mrf.mxu0
        %2431 = vmatprep.mubr.bf16.mxu0 %v2186
        %2432 = vmatmul.mubr.bf16.gmra.mxu0 %v2185
        %v2433 = vpop.f32.mrf.mxu0
        %v2434 = vadd.f32 0.0, %v2433
        %v2435 = vpop.f32.mrf.mxu0
        %v2436 = vpop.f32.mrf.mxu0
        %v2437 = vadd.f32 0.0, %v2436
        %v2438 = vpop.f32.mrf.mxu0
        %2439 = vmatprep.mubr.bf16.mxu0 %v2188
        %2440 = vmatmul.mubr.bf16.gmra.mxu0 %v2187
        %v2441 = vpop.f32.mrf.mxu0
        %v2442 = vadd.f32 0.0, %v2441
        %v2443 = vpop.f32.mrf.mxu0
        %v2444 = vpop.f32.mrf.mxu0
        %v2445 = vadd.f32 0.0, %v2444
        %v2446 = vpop.f32.mrf.mxu0
        %2447 = vmatprep.mubr.bf16.mxu0 %v2190
        %2448 = vmatmul.mubr.bf16.gmra.mxu0 %v2189
        %v2449 = vpop.f32.mrf.mxu0
        %v2450 = vadd.f32 0.0, %v2449
        %v2451 = vpop.f32.mrf.mxu0
        %v2452 = vpop.f32.mrf.mxu0
        %v2453 = vadd.f32 0.0, %v2452
        %v2454 = vpop.f32.mrf.mxu0
        %2455 = vmatprep.mubr.bf16.mxu0 %v2192
        %2456 = vmatmul.mubr.bf16.gmra.mxu0 %v2191
        %v2457 = vpop.f32.mrf.mxu0
        %v2458 = vadd.f32 0.0, %v2457
        %v2459 = vpop.f32.mrf.mxu0
        %v2460 = vpop.f32.mrf.mxu0
        %v2461 = vadd.f32 0.0, %v2460
        %v2462 = vpop.f32.mrf.mxu0
        %2463 = vmatprep.mubr.bf16.mxu0 %v2194
        %2464 = vmatmul.mubr.bf16.gmra.mxu0 %v2193
        %v2465 = vpop.f32.mrf.mxu0
        %v2466 = vadd.f32 0.0, %v2465
        %v2467 = vpop.f32.mrf.mxu0
        %v2468 = vpop.f32.mrf.mxu0
        %v2469 = vadd.f32 0.0, %v2468
        %v2470 = vpop.f32.mrf.mxu0
        %2471 = vmatprep.mubr.bf16.mxu0 %v2196
        %2472 = vmatmul.mubr.bf16.gmra.mxu0 %v2195
        %v2473 = vpop.f32.mrf.mxu0
        %v2474 = vadd.f32 0.0, %v2473
        %v2475 = vpop.f32.mrf.mxu0
        %v2476 = vpop.f32.mrf.mxu0
        %v2477 = vadd.f32 0.0, %v2476
        %v2478 = vpop.f32.mrf.mxu0
        %2479 = vmatprep.mubr.bf16.mxu0 %v2198
        %2480 = vmatmul.mubr.bf16.gmra.mxu0 %v2197
        %v2481 = vpop.f32.mrf.mxu0
        %v2482 = vadd.f32 0.0, %v2481
        %v2483 = vpop.f32.mrf.mxu0
        %v2484 = vpop.f32.mrf.mxu0
        %v2485 = vadd.f32 0.0, %v2484
        %v2486 = vpop.f32.mrf.mxu0
        %2487 = vdwg.mxu0
        %v2488 = vadd.f32 %v2135, %v2362
        %v2489 = vadd.f32 %v2136, %v2365
        %v2490 = vadd.f32 %v2137, %v2370
        %v2491 = vadd.f32 %v2138, %v2373
        %v2492 = vadd.f32 %v2139, %v2378
        %v2493 = vadd.f32 %v2140, %v2381
        %v2494 = vadd.f32 %v2141, %v2386
        %v2495 = vadd.f32 %v2142, %v2389
        %v2496 = vadd.f32 %v2143, %v2394
        %v2497 = vadd.f32 %v2144, %v2397
        %v2498 = vadd.f32 %v2145, %v2402
        %v2499 = vadd.f32 %v2146, %v2405
        %v2500 = vadd.f32 %v2147, %v2410
        %v2501 = vadd.f32 %v2148, %v2413
        %v2502 = vadd.f32 %v2149, %v2418
        %v2503 = vadd.f32 %v2150, %v2421
        %v2504 = vadd.f32 %v2151, %v2426
        %v2505 = vadd.f32 %v2152, %v2429
        %v2506 = vadd.f32 %v2153, %v2434
        %v2507 = vadd.f32 %v2154, %v2437
        %v2508 = vadd.f32 %v2155, %v2442
        %v2509 = vadd.f32 %v2156, %v2445
        %v2510 = vadd.f32 %v2157, %v2450
        %v2511 = vadd.f32 %v2158, %v2453
        %v2512 = vadd.f32 %v2159, %v2458
        %v2513 = vadd.f32 %v2160, %v2461
        %v2514 = vadd.f32 %v2161, %v2466
        %v2515 = vadd.f32 %v2162, %v2469
        %v2516 = vadd.f32 %v2163, %v2474
        %v2517 = vadd.f32 %v2164, %v2477
        %v2518 = vadd.f32 %v2165, %v2482
        %v2519 = vadd.f32 %v2166, %v2485
        %2520 = vst [vmem:[#allocation5] sm:$0xff] %v2488
        %2521 = vst [vmem:[#allocation5 + $0x8] sm:$0xff] %v2489
        %2522 = vst [vmem:[#allocation5 + $0x10] sm:$0xff] %v2490
        %2523 = vst [vmem:[#allocation5 + $0x18] sm:$0xff] %v2491
        %2524 = vst [vmem:[#allocation5 + $0x20] sm:$0xff] %v2492
        %2525 = vst [vmem:[#allocation5 + $0x28] sm:$0xff] %v2493
        %2526 = vst [vmem:[#allocation5 + $0x30] sm:$0xff] %v2494
        %2527 = vst [vmem:[#allocation5 + $0x38] sm:$0xff] %v2495
        %2528 = vst [vmem:[#allocation5 + $0x40] sm:$0xff] %v2496
        %2529 = vst [vmem:[#allocation5 + $0x48] sm:$0xff] %v2497
        %2530 = vst [vmem:[#allocation5 + $0x50] sm:$0xff] %v2498
        %2531 = vst [vmem:[#allocation5 + $0x58] sm:$0xff] %v2499
        %2532 = vst [vmem:[#allocation5 + $0x60] sm:$0xff] %v2500
        %2533 = vst [vmem:[#allocation5 + $0x68] sm:$0xff] %v2501
        %2534 = vst [vmem:[#allocation5 + $0x70] sm:$0xff] %v2502
        %2535 = vst [vmem:[#allocation5 + $0x78] sm:$0xff] %v2503
        %2536 = vst [vmem:[#allocation5 + $0x80] sm:$0xff] %v2504
        %2537 = vst [vmem:[#allocation5 + $0x88] sm:$0xff] %v2505
        %2538 = vst [vmem:[#allocation5 + $0x90] sm:$0xff] %v2506
        %2539 = vst [vmem:[#allocation5 + $0x98] sm:$0xff] %v2507
        %2540 = vst [vmem:[#allocation5 + $0xa0] sm:$0xff] %v2508
        %2541 = vst [vmem:[#allocation5 + $0xa8] sm:$0xff] %v2509
        %2542 = vst [vmem:[#allocation5 + $0xb0] sm:$0xff] %v2510
        %2543 = vst [vmem:[#allocation5 + $0xb8] sm:$0xff] %v2511
        %2544 = vst [vmem:[#allocation5 + $0xc0] sm:$0xff] %v2512
        %2545 = vst [vmem:[#allocation5 + $0xc8] sm:$0xff] %v2513
        %2546 = vst [vmem:[#allocation5 + $0xd0] sm:$0xff] %v2514
        %2547 = vst [vmem:[#allocation5 + $0xd8] sm:$0xff] %v2515
        %2548 = vst [vmem:[#allocation5 + $0xe0] sm:$0xff] %v2516
        %2549 = vst [vmem:[#allocation5 + $0xe8] sm:$0xff] %v2517
        %2550 = vst [vmem:[#allocation5 + $0xf0] sm:$0xff] %v2518
        %2551 = vst [vmem:[#allocation5 + $0xf8] sm:$0xff] %v2519
        %2552 = vst.msk [vmem:[#allocation3] sm:$0xff] %vm1910, %v1238
        %2553 = vst.msk [vmem:[#allocation3 + $0x8] sm:$0xff] %vm1910, %v1239
        %2554 = vst.msk [vmem:[#allocation3 + $0x10] sm:$0xff] %vm1910, %v1240
        %2555 = vst.msk [vmem:[#allocation3 + $0x18] sm:$0xff] %vm1910, %v1241
        %2556 = vst.msk [vmem:[#allocation3 + $0x20] sm:$0xff] %vm1910, %v1242
        %2557 = vst.msk [vmem:[#allocation3 + $0x28] sm:$0xff] %vm1910, %v1243
        %2558 = vst.msk [vmem:[#allocation3 + $0x30] sm:$0xff] %vm1910, %v1244
        %2559 = vst.msk [vmem:[#allocation3 + $0x38] sm:$0xff] %vm1910, %v1245
        %2560 = vst.msk [vmem:[#allocation3 + $0x40] sm:$0xff] %vm1910, %v1246
        %2561 = vst.msk [vmem:[#allocation3 + $0x48] sm:$0xff] %vm1910, %v1247
        %2562 = vst.msk [vmem:[#allocation3 + $0x50] sm:$0xff] %vm1910, %v1248
        %2563 = vst.msk [vmem:[#allocation3 + $0x58] sm:$0xff] %vm1910, %v1249
        %2564 = vst.msk [vmem:[#allocation3 + $0x60] sm:$0xff] %vm1910, %v1250
        %2565 = vst.msk [vmem:[#allocation3 + $0x68] sm:$0xff] %vm1910, %v1251
        %2566 = vst.msk [vmem:[#allocation3 + $0x70] sm:$0xff] %vm1910, %v1252
        %2567 = vst.msk [vmem:[#allocation3 + $0x78] sm:$0xff] %vm1910, %v1253
        %2568 = vst.msk [vmem:[#allocation3 + $0x80] sm:$0xff] %vm1910, %v1254
        %2569 = vst.msk [vmem:[#allocation3 + $0x88] sm:$0xff] %vm1910, %v1255
        %2570 = vst.msk [vmem:[#allocation3 + $0x90] sm:$0xff] %vm1910, %v1256
        %2571 = vst.msk [vmem:[#allocation3 + $0x98] sm:$0xff] %vm1910, %v1257
        %2572 = vst.msk [vmem:[#allocation3 + $0xa0] sm:$0xff] %vm1910, %v1258
        %2573 = vst.msk [vmem:[#allocation3 + $0xa8] sm:$0xff] %vm1910, %v1259
        %2574 = vst.msk [vmem:[#allocation3 + $0xb0] sm:$0xff] %vm1910, %v1260
        %2575 = vst.msk [vmem:[#allocation3 + $0xb8] sm:$0xff] %vm1910, %v1261
        %2576 = vst.msk [vmem:[#allocation3 + $0xc0] sm:$0xff] %vm1910, %v1262
        %2577 = vst.msk [vmem:[#allocation3 + $0xc8] sm:$0xff] %vm1910, %v1263
        %2578 = vst.msk [vmem:[#allocation3 + $0xd0] sm:$0xff] %vm1910, %v1264
        %2579 = vst.msk [vmem:[#allocation3 + $0xd8] sm:$0xff] %vm1910, %v1265
        %2580 = vst.msk [vmem:[#allocation3 + $0xe0] sm:$0xff] %vm1910, %v1266
        %2581 = vst.msk [vmem:[#allocation3 + $0xe8] sm:$0xff] %vm1910, %v1267
        %2582 = vst.msk [vmem:[#allocation3 + $0xf0] sm:$0xff] %vm1910, %v1268
        %2583 = vst.msk [vmem:[#allocation3 + $0xf8] sm:$0xff] %vm1910, %v1269
        %p2584 = scmp.eq.s32.totalorder %s30, 1
        // Predicated region
        $region49: #{tpu_custom_call.1} parent=31 // pred_check
          %p2585 = pneg %p2584
        $region50: #{tpu_custom_call.1} parent=31 // pred_check_branch
          %2587 = sbr.rel (%p2585) target = $region52
        $region51: #{tpu_custom_call.1} parent=31 // pred_region
          %v2588 = vld [vmem:[#allocation5] sm:$0xff]
          %v2589 = vld [vmem:[#allocation5 + $0x8] sm:$0xff]
          %v2590 = vld [vmem:[#allocation5 + $0x10] sm:$0xff]
          %v2591 = vld [vmem:[#allocation5 + $0x18] sm:$0xff]
          %v2592 = vld [vmem:[#allocation5 + $0x20] sm:$0xff]
          %v2593 = vld [vmem:[#allocation5 + $0x28] sm:$0xff]
          %v2594 = vld [vmem:[#allocation5 + $0x30] sm:$0xff]
          %v2595 = vld [vmem:[#allocation5 + $0x38] sm:$0xff]
          %v2596 = vld [vmem:[#allocation5 + $0x40] sm:$0xff]
          %v2597 = vld [vmem:[#allocation5 + $0x48] sm:$0xff]
          %v2598 = vld [vmem:[#allocation5 + $0x50] sm:$0xff]
          %v2599 = vld [vmem:[#allocation5 + $0x58] sm:$0xff]
          %v2600 = vld [vmem:[#allocation5 + $0x60] sm:$0xff]
          %v2601 = vld [vmem:[#allocation5 + $0x68] sm:$0xff]
          %v2602 = vld [vmem:[#allocation5 + $0x70] sm:$0xff]
          %v2603 = vld [vmem:[#allocation5 + $0x78] sm:$0xff]
          %v2604 = vld [vmem:[#allocation5 + $0x80] sm:$0xff]
          %v2605 = vld [vmem:[#allocation5 + $0x88] sm:$0xff]
          %v2606 = vld [vmem:[#allocation5 + $0x90] sm:$0xff]
          %v2607 = vld [vmem:[#allocation5 + $0x98] sm:$0xff]
          %v2608 = vld [vmem:[#allocation5 + $0xa0] sm:$0xff]
          %v2609 = vld [vmem:[#allocation5 + $0xa8] sm:$0xff]
          %v2610 = vld [vmem:[#allocation5 + $0xb0] sm:$0xff]
          %v2611 = vld [vmem:[#allocation5 + $0xb8] sm:$0xff]
          %v2612 = vld [vmem:[#allocation5 + $0xc0] sm:$0xff]
          %v2613 = vld [vmem:[#allocation5 + $0xc8] sm:$0xff]
          %v2614 = vld [vmem:[#allocation5 + $0xd0] sm:$0xff]
          %v2615 = vld [vmem:[#allocation5 + $0xd8] sm:$0xff]
          %v2616 = vld [vmem:[#allocation5 + $0xe0] sm:$0xff]
          %v2617 = vld [vmem:[#allocation5 + $0xe8] sm:$0xff]
          %v2618 = vld [vmem:[#allocation5 + $0xf0] sm:$0xff]
          %v2619 = vld [vmem:[#allocation5 + $0xf8] sm:$0xff]
          %v2620 = vld [vmem:[#allocation4] sm:$0xff]
          %v2621 = vld [vmem:[#allocation4 + $0x8] sm:$0xff]
          %v2622 = vld [vmem:[#allocation4 + $0x10] sm:$0xff]
          %v2623 = vld [vmem:[#allocation4 + $0x18] sm:$0xff]
          %v2624 = vld [vmem:[#allocation4 + $0x20] sm:$0xff]
          %v2625 = vld [vmem:[#allocation4 + $0x28] sm:$0xff]
          %v2626 = vld [vmem:[#allocation4 + $0x30] sm:$0xff]
          %v2627 = vld [vmem:[#allocation4 + $0x38] sm:$0xff]
          %v2628 = vld [vmem:[#allocation4 + $0x40] sm:$0xff]
          %v2629 = vld [vmem:[#allocation4 + $0x48] sm:$0xff]
          %v2630 = vld [vmem:[#allocation4 + $0x50] sm:$0xff]
          %v2631 = vld [vmem:[#allocation4 + $0x58] sm:$0xff]
          %v2632 = vld [vmem:[#allocation4 + $0x60] sm:$0xff]
          %v2633 = vld [vmem:[#allocation4 + $0x68] sm:$0xff]
          %v2634 = vld [vmem:[#allocation4 + $0x70] sm:$0xff]
          %v2635 = vld [vmem:[#allocation4 + $0x78] sm:$0xff]
          %v2636 = vld [vmem:[#allocation4 + $0x80] sm:$0xff]
          %v2637 = vld [vmem:[#allocation4 + $0x88] sm:$0xff]
          %v2638 = vld [vmem:[#allocation4 + $0x90] sm:$0xff]
          %v2639 = vld [vmem:[#allocation4 + $0x98] sm:$0xff]
          %v2640 = vld [vmem:[#allocation4 + $0xa0] sm:$0xff]
          %v2641 = vld [vmem:[#allocation4 + $0xa8] sm:$0xff]
          %v2642 = vld [vmem:[#allocation4 + $0xb0] sm:$0xff]
          %v2643 = vld [vmem:[#allocation4 + $0xb8] sm:$0xff]
          %v2644 = vld [vmem:[#allocation4 + $0xc0] sm:$0xff]
          %v2645 = vld [vmem:[#allocation4 + $0xc8] sm:$0xff]
          %v2646 = vld [vmem:[#allocation4 + $0xd0] sm:$0xff]
          %v2647 = vld [vmem:[#allocation4 + $0xd8] sm:$0xff]
          %v2648 = vld [vmem:[#allocation4 + $0xe0] sm:$0xff]
          %v2649 = vld [vmem:[#allocation4 + $0xe8] sm:$0xff]
          %v2650 = vld [vmem:[#allocation4 + $0xf0] sm:$0xff]
          %v2651 = vld [vmem:[#allocation4 + $0xf8] sm:$0xff]
          %2653 = vset.pattern.permute.xlu0 0
          %2654 = vperm.xlu0 %2653, %v2620
          %v2655 = vpop.permute.xlu0 %2654
          %2658 = vset.pattern.permute.xlu0 0
          %2659 = vperm.xlu0 %2658, %v2621
          %v2660 = vpop.permute.xlu0 %2659
          %2663 = vset.pattern.permute.xlu0 0
          %2664 = vperm.xlu0 %2663, %v2622
          %v2665 = vpop.permute.xlu0 %2664
          %2668 = vset.pattern.permute.xlu0 0
          %2669 = vperm.xlu0 %2668, %v2623
          %v2670 = vpop.permute.xlu0 %2669
          %2673 = vset.pattern.permute.xlu0 0
          %2674 = vperm.xlu0 %2673, %v2624
          %v2675 = vpop.permute.xlu0 %2674
          %2678 = vset.pattern.permute.xlu0 0
          %2679 = vperm.xlu0 %2678, %v2625
          %v2680 = vpop.permute.xlu0 %2679
          %2683 = vset.pattern.permute.xlu0 0
          %2684 = vperm.xlu0 %2683, %v2626
          %v2685 = vpop.permute.xlu0 %2684
          %2688 = vset.pattern.permute.xlu0 0
          %2689 = vperm.xlu0 %2688, %v2627
          %v2690 = vpop.permute.xlu0 %2689
          %2693 = vset.pattern.permute.xlu0 0
          %2694 = vperm.xlu0 %2693, %v2628
          %v2695 = vpop.permute.xlu0 %2694
          %2698 = vset.pattern.permute.xlu0 0
          %2699 = vperm.xlu0 %2698, %v2629
          %v2700 = vpop.permute.xlu0 %2699
          %2703 = vset.pattern.permute.xlu0 0
          %2704 = vperm.xlu0 %2703, %v2630
          %v2705 = vpop.permute.xlu0 %2704
          %2708 = vset.pattern.permute.xlu0 0
          %2709 = vperm.xlu0 %2708, %v2631
          %v2710 = vpop.permute.xlu0 %2709
          %2713 = vset.pattern.permute.xlu0 0
          %2714 = vperm.xlu0 %2713, %v2632
          %v2715 = vpop.permute.xlu0 %2714
          %2718 = vset.pattern.permute.xlu0 0
          %2719 = vperm.xlu0 %2718, %v2633
          %v2720 = vpop.permute.xlu0 %2719
          %2723 = vset.pattern.permute.xlu0 0
          %2724 = vperm.xlu0 %2723, %v2634
          %v2725 = vpop.permute.xlu0 %2724
          %2728 = vset.pattern.permute.xlu0 0
          %2729 = vperm.xlu0 %2728, %v2635
          %v2730 = vpop.permute.xlu0 %2729
          %2733 = vset.pattern.permute.xlu0 0
          %2734 = vperm.xlu0 %2733, %v2636
          %v2735 = vpop.permute.xlu0 %2734
          %2738 = vset.pattern.permute.xlu0 0
          %2739 = vperm.xlu0 %2738, %v2637
          %v2740 = vpop.permute.xlu0 %2739
          %2743 = vset.pattern.permute.xlu0 0
          %2744 = vperm.xlu0 %2743, %v2638
          %v2745 = vpop.permute.xlu0 %2744
          %2748 = vset.pattern.permute.xlu0 0
          %2749 = vperm.xlu0 %2748, %v2639
          %v2750 = vpop.permute.xlu0 %2749
          %2753 = vset.pattern.permute.xlu0 0
          %2754 = vperm.xlu0 %2753, %v2640
          %v2755 = vpop.permute.xlu0 %2754
          %2758 = vset.pattern.permute.xlu0 0
          %2759 = vperm.xlu0 %2758, %v2641
          %v2760 = vpop.permute.xlu0 %2759
          %2763 = vset.pattern.permute.xlu0 0
          %2764 = vperm.xlu0 %2763, %v2642
          %v2765 = vpop.permute.xlu0 %2764
          %2768 = vset.pattern.permute.xlu0 0
          %2769 = vperm.xlu0 %2768, %v2643
          %v2770 = vpop.permute.xlu0 %2769
          %2773 = vset.pattern.permute.xlu0 0
          %2774 = vperm.xlu0 %2773, %v2644
          %v2775 = vpop.permute.xlu0 %2774
          %2778 = vset.pattern.permute.xlu0 0
          %2779 = vperm.xlu0 %2778, %v2645
          %v2780 = vpop.permute.xlu0 %2779
          %2783 = vset.pattern.permute.xlu0 0
          %2784 = vperm.xlu0 %2783, %v2646
          %v2785 = vpop.permute.xlu0 %2784
          %2788 = vset.pattern.permute.xlu0 0
          %2789 = vperm.xlu0 %2788, %v2647
          %v2790 = vpop.permute.xlu0 %2789
          %2793 = vset.pattern.permute.xlu0 0
          %2794 = vperm.xlu0 %2793, %v2648
          %v2795 = vpop.permute.xlu0 %2794
          %2798 = vset.pattern.permute.xlu0 0
          %2799 = vperm.xlu0 %2798, %v2649
          %v2800 = vpop.permute.xlu0 %2799
          %2803 = vset.pattern.permute.xlu0 0
          %2804 = vperm.xlu0 %2803, %v2650
          %v2805 = vpop.permute.xlu0 %2804
          %2808 = vset.pattern.permute.xlu0 0
          %2809 = vperm.xlu0 %2808, %v2651
          %v2810 = vpop.permute.xlu0 %2809
          %v2812 = vrcp.pop %v2655
          %v2813 = vmul.f32 %v2588, %v2812
          %v2814 = vrcp.pop %v2660
          %v2815 = vmul.f32 %v2589, %v2814
          %v2816 = vrcp.pop %v2665
          %v2817 = vmul.f32 %v2590, %v2816
          %v2818 = vrcp.pop %v2670
          %v2819 = vmul.f32 %v2591, %v2818
          %v2820 = vrcp.pop %v2675
          %v2821 = vmul.f32 %v2592, %v2820
          %v2822 = vrcp.pop %v2680
          %v2823 = vmul.f32 %v2593, %v2822
          %v2824 = vrcp.pop %v2685
          %v2825 = vmul.f32 %v2594, %v2824
          %v2826 = vrcp.pop %v2690
          %v2827 = vmul.f32 %v2595, %v2826
          %v2828 = vrcp.pop %v2695
          %v2829 = vmul.f32 %v2596, %v2828
          %v2830 = vrcp.pop %v2700
          %v2831 = vmul.f32 %v2597, %v2830
          %v2832 = vrcp.pop %v2705
          %v2833 = vmul.f32 %v2598, %v2832
          %v2834 = vrcp.pop %v2710
          %v2835 = vmul.f32 %v2599, %v2834
          %v2836 = vrcp.pop %v2715
          %v2837 = vmul.f32 %v2600, %v2836
          %v2838 = vrcp.pop %v2720
          %v2839 = vmul.f32 %v2601, %v2838
          %v2840 = vrcp.pop %v2725
          %v2841 = vmul.f32 %v2602, %v2840
          %v2842 = vrcp.pop %v2730
          %v2843 = vmul.f32 %v2603, %v2842
          %v2844 = vrcp.pop %v2735
          %v2845 = vmul.f32 %v2604, %v2844
          %v2846 = vrcp.pop %v2740
          %v2847 = vmul.f32 %v2605, %v2846
          %v2848 = vrcp.pop %v2745
          %v2849 = vmul.f32 %v2606, %v2848
          %v2850 = vrcp.pop %v2750
          %v2851 = vmul.f32 %v2607, %v2850
          %v2852 = vrcp.pop %v2755
          %v2853 = vmul.f32 %v2608, %v2852
          %v2854 = vrcp.pop %v2760
          %v2855 = vmul.f32 %v2609, %v2854
          %v2856 = vrcp.pop %v2765
          %v2857 = vmul.f32 %v2610, %v2856
          %v2858 = vrcp.pop %v2770
          %v2859 = vmul.f32 %v2611, %v2858
          %v2860 = vrcp.pop %v2775
          %v2861 = vmul.f32 %v2612, %v2860
          %v2862 = vrcp.pop %v2780
          %v2863 = vmul.f32 %v2613, %v2862
          %v2864 = vrcp.pop %v2785
          %v2865 = vmul.f32 %v2614, %v2864
          %v2866 = vrcp.pop %v2790
          %v2867 = vmul.f32 %v2615, %v2866
          %v2868 = vrcp.pop %v2795
          %v2869 = vmul.f32 %v2616, %v2868
          %v2870 = vrcp.pop %v2800
          %v2871 = vmul.f32 %v2617, %v2870
          %v2872 = vrcp.pop %v2805
          %v2873 = vmul.f32 %v2618, %v2872
          %v2874 = vrcp.pop %v2810
          %v2875 = vmul.f32 %v2619, %v2874
          %v2876 = vpack.c.bf16 %v2815, %v2813
          %v2877 = vpack.c.bf16 %v2819, %v2817
          %v2878 = vpack.c.bf16 %v2823, %v2821
          %v2879 = vpack.c.bf16 %v2827, %v2825
          %v2880 = vpack.c.bf16 %v2831, %v2829
          %v2881 = vpack.c.bf16 %v2835, %v2833
          %v2882 = vpack.c.bf16 %v2839, %v2837
          %v2883 = vpack.c.bf16 %v2843, %v2841
          %v2884 = vpack.c.bf16 %v2847, %v2845
          %v2885 = vpack.c.bf16 %v2851, %v2849
          %v2886 = vpack.c.bf16 %v2855, %v2853
          %v2887 = vpack.c.bf16 %v2859, %v2857
          %v2888 = vpack.c.bf16 %v2863, %v2861
          %v2889 = vpack.c.bf16 %v2867, %v2865
          %v2890 = vpack.c.bf16 %v2871, %v2869
          %v2891 = vpack.c.bf16 %v2875, %v2873
          %v2908 = vunpack.c.l.b16 %v2876
          %v2909 = vunpack.c.h.b16 %v2876
          %v2910 = vunpack.c.l.b16 %v2877
          %v2911 = vunpack.c.h.b16 %v2877
          %v2912 = vunpack.c.l.b16 %v2878
          %v2913 = vunpack.c.h.b16 %v2878
          %v2914 = vunpack.c.l.b16 %v2879
          %v2915 = vunpack.c.h.b16 %v2879
          %v2916 = vunpack.c.l.b16 %v2880
          %v2917 = vunpack.c.h.b16 %v2880
          %v2918 = vunpack.c.l.b16 %v2881
          %v2919 = vunpack.c.h.b16 %v2881
          %v2920 = vunpack.c.l.b16 %v2882
          %v2921 = vunpack.c.h.b16 %v2882
          %v2922 = vunpack.c.l.b16 %v2883
          %v2923 = vunpack.c.h.b16 %v2883
          %v2924 = vunpack.c.l.b16 %v2884
          %v2925 = vunpack.c.h.b16 %v2884
          %v2926 = vunpack.c.l.b16 %v2885
          %v2927 = vunpack.c.h.b16 %v2885
          %v2928 = vunpack.c.l.b16 %v2886
          %v2929 = vunpack.c.h.b16 %v2886
          %v2930 = vunpack.c.l.b16 %v2887
          %v2931 = vunpack.c.h.b16 %v2887
          %v2932 = vunpack.c.l.b16 %v2888
          %v2933 = vunpack.c.h.b16 %v2888
          %v2934 = vunpack.c.l.b16 %v2889
          %v2935 = vunpack.c.h.b16 %v2889
          %v2936 = vunpack.c.l.b16 %v2890
          %v2937 = vunpack.c.h.b16 %v2890
          %v2938 = vunpack.c.l.b16 %v2891
          %v2939 = vunpack.c.h.b16 %v2891
          %v2940 = vpack.c.b16 %v2908, %v2908
          %v2941 = vpack.c.b16 %v2909, %v2909
          %v2942 = vpack.c.b16 %v2910, %v2910
          %v2943 = vpack.c.b16 %v2911, %v2911
          %v2944 = vpack.c.b16 %v2912, %v2912
          %v2945 = vpack.c.b16 %v2913, %v2913
          %v2946 = vpack.c.b16 %v2914, %v2914
          %v2947 = vpack.c.b16 %v2915, %v2915
          %v2948 = vpack.c.b16 %v2916, %v2916
          %v2949 = vpack.c.b16 %v2917, %v2917
          %v2950 = vpack.c.b16 %v2918, %v2918
          %v2951 = vpack.c.b16 %v2919, %v2919
          %v2952 = vpack.c.b16 %v2920, %v2920
          %v2953 = vpack.c.b16 %v2921, %v2921
          %v2954 = vpack.c.b16 %v2922, %v2922
          %v2955 = vpack.c.b16 %v2923, %v2923
          %v2956 = vpack.c.b16 %v2924, %v2924
          %v2957 = vpack.c.b16 %v2925, %v2925
          %v2958 = vpack.c.b16 %v2926, %v2926
          %v2959 = vpack.c.b16 %v2927, %v2927
          %v2960 = vpack.c.b16 %v2928, %v2928
          %v2961 = vpack.c.b16 %v2929, %v2929
          %v2962 = vpack.c.b16 %v2930, %v2930
          %v2963 = vpack.c.b16 %v2931, %v2931
          %v2964 = vpack.c.b16 %v2932, %v2932
          %v2965 = vpack.c.b16 %v2933, %v2933
          %v2966 = vpack.c.b16 %v2934, %v2934
          %v2967 = vpack.c.b16 %v2935, %v2935
          %v2968 = vpack.c.b16 %v2936, %v2936
          %v2969 = vpack.c.b16 %v2937, %v2937
          %v2970 = vpack.c.b16 %v2938, %v2938
          %v2971 = vpack.c.b16 %v2939, %v2939
          %3004 = vst [vmem:[%s298] sm:$0xf] %v2940
          %3005 = vst [vmem:[%s298 + $0x4] sm:$0xf] %v2941
          %3006 = vst [vmem:[%s298 + $0x8] sm:$0xf] %v2942
          %3007 = vst [vmem:[%s298 + $0xc] sm:$0xf] %v2943
          %3008 = vst [vmem:[%s298 + $0x10] sm:$0xf] %v2944
          %3009 = vst [vmem:[%s298 + $0x14] sm:$0xf] %v2945
          %3010 = vst [vmem:[%s298 + $0x18] sm:$0xf] %v2946
          %3011 = vst [vmem:[%s298 + $0x1c] sm:$0xf] %v2947
          %3012 = vst [vmem:[%s298 + $0x20] sm:$0xf] %v2948
          %3013 = vst [vmem:[%s298 + $0x24] sm:$0xf] %v2949
          %3014 = vst [vmem:[%s298 + $0x28] sm:$0xf] %v2950
          %3015 = vst [vmem:[%s298 + $0x2c] sm:$0xf] %v2951
          %3016 = vst [vmem:[%s298 + $0x30] sm:$0xf] %v2952
          %3017 = vst [vmem:[%s298 + $0x34] sm:$0xf] %v2953
          %3018 = vst [vmem:[%s298 + $0x38] sm:$0xf] %v2954
          %3019 = vst [vmem:[%s298 + $0x3c] sm:$0xf] %v2955
          %3020 = vst [vmem:[%s298 + $0x40] sm:$0xf] %v2956
          %3021 = vst [vmem:[%s298 + $0x44] sm:$0xf] %v2957
          %3022 = vst [vmem:[%s298 + $0x48] sm:$0xf] %v2958
          %3023 = vst [vmem:[%s298 + $0x4c] sm:$0xf] %v2959
          %3024 = vst [vmem:[%s298 + $0x50] sm:$0xf] %v2960
          %3025 = vst [vmem:[%s298 + $0x54] sm:$0xf] %v2961
          %3026 = vst [vmem:[%s298 + $0x58] sm:$0xf] %v2962
          %3027 = vst [vmem:[%s298 + $0x5c] sm:$0xf] %v2963
          %3028 = vst [vmem:[%s298 + $0x60] sm:$0xf] %v2964
          %3029 = vst [vmem:[%s298 + $0x64] sm:$0xf] %v2965
          %3030 = vst [vmem:[%s298 + $0x68] sm:$0xf] %v2966
          %3031 = vst [vmem:[%s298 + $0x6c] sm:$0xf] %v2967
          %3032 = vst [vmem:[%s298 + $0x70] sm:$0xf] %v2968
          %3033 = vst [vmem:[%s298 + $0x74] sm:$0xf] %v2969
          %3034 = vst [vmem:[%s298 + $0x78] sm:$0xf] %v2970
          %3035 = vst [vmem:[%s298 + $0x7c] sm:$0xf] %v2971
        $region52: #{tpu_custom_call.1} parent=31 // pred_fallthru
          _
        %s3036 = sand.u32 %s136, 1
        %s3037 = scalar_lea.sflag [#allocation8], %s3036
        %s3038 = sand.u32 %s136, 1
        %s3039 = smul.addr %s3038, 128
        %s3040 = scalar_lea.vmem [#allocation12], %s3039
        // Predicated region
        $region53: #{tpu_custom_call.1} parent=31 // pred_check
          %p3041 = pneg %p146
        $region54: #{tpu_custom_call.1} parent=31 // pred_check_branch
          %3043 = sbr.rel (%p3041) target = $region56
        $region55: #{tpu_custom_call.1} parent=31 // pred_region
          %s3044 = smul.u32 32, %s29
          %s3046 = ssub.s32 2048, 2048
          %3047 = vsyncadd %s3037, %s3046
          %s3048 = smul.addr %s28, 64
          %s3049 = sadd.s32 %s3044, %s3048
          %s3050 = smul.addr %s3049, 64
          %s3051 = scalar_lea.hbm %s3, %s3050
          %s3052 = sshll.u32 %s3040, 4
          %s3053 = int_to_ptr.vmem [resolvable:$true] %s3052
          %3058 = dma.vmem_to_hbm [thread:$0]  %s3053, 2048, %s3051, %s3037, 64, 64, 4
        $region56: #{tpu_custom_call.1} parent=31 // pred_fallthru
          _
      $region32: #{tpu_custom_call.1} parent=5 // pred_fallthru
        _
      %p3059 = scmp.le.s32.totalorder 2, %s18
      // Predicated region
      $region57: #{tpu_custom_call.1} parent=5 // pred_check
        %p3060 = pneg %p3059
      $region58: #{tpu_custom_call.1} parent=5 // pred_check_branch
        %3062 = sbr.rel (%p3060) target = $region60
      $region59: #{tpu_custom_call.1} parent=5 // pred_region
        %s3063 = ssub.s32 %s18, 2
        // Predicated region
        $region61: #{tpu_custom_call.1} parent=59 // pred_check
          %p3064 = pneg %p152
        $region62: #{tpu_custom_call.1} parent=59 // pred_check_branch
          %3066 = sbr.rel (%p3064) target = $region64
        $region63: #{tpu_custom_call.1} parent=59 // pred_region
          %s3067 = sand.u32 %s137, 1
          %s3068 = scalar_lea.sflag [#allocation8], %s3067
          %s3069 = sand.u32 %s137, 1
          %s3070 = smul.addr %s3069, 128
          %s3071 = scalar_lea.vmem [#allocation12], %s3070
          %3072 = dma.done %s3068, 2048
        $region64: #{tpu_custom_call.1} parent=59 // pred_fallthru
          _
      $region60: #{tpu_custom_call.1} parent=5 // pred_fallthru
        _
    $region6: #{tpu_custom_call.1} parent=1 // loop_footer
      %s22 = sadd.s32 1, %s18
    $region7: #{tpu_custom_call.1} parent=1 // loop_footer_branch
      %17 = sbr.rel target = $region3
    $region8: #{tpu_custom_call.1} parent=1 // loop_exit
      _
    %3073 = vsyncpa [#allocation7], 1
    %s3074 = scalar_lea.sflag [#allocation7], 1
    %3075 = vsyncpa %s3074, 1
    %3076 = vsyncpa [#allocation10], 1
    %s3077 = scalar_lea.sflag [#allocation10], 1
    %3078 = vsyncpa %s3077, 1
    %3079 = vsyncpa [#allocation8], 1
    %s3080 = scalar_lea.sflag [#allocation8], 1
    %3081 = vsyncpa %s3080, 1

</llo_original>
